<compile_context>
chip_gen: v5e
topology: v5e:2x2
jax: 0.10.0
libtpu: 0.0.40
codegen_flags: <defaults>
</compile_context>

<pallas_src>
import functools

import jax
import jax.numpy as jnp
from jax.experimental import pallas as pl
from jax.experimental.pallas import tpu as pltpu

EPS = 1e-5        # nn.LayerNorm default
NEG_INF = -1e30   # additive mask value for cross-batch attention entries


def _layernorm(x, gamma, beta):
    mean = jnp.mean(x, axis=-1, keepdims=True)
    var = jnp.mean((x - mean) ** 2, axis=-1, keepdims=True)  # biased, like torch
    return (x - mean) * jax.lax.rsqrt(var + EPS) * gamma + beta


# ----------------------------------------------------------------------------
# One grid step == one encoder layer; the head runs on the last step.
# ----------------------------------------------------------------------------
def model_kernel(x_ref, wqkv_ref, wu_ref, w1_ref, w2_ref, small_ref,
                 hw1_ref, hb1_ref, hw2_ref, hb2_ref, o_ref, x_sc,
                 *, b, t, k, heads, num_layers):
    f32 = jnp.float32
    bf16 = jnp.bfloat16
    bt = b * t
    hk = heads * k
    l = pl.program_id(0)

    # Seed the persistent activation scratch from the kernel input on layer 0.
    @pl.when(l == 0)
    def _():
        x_sc[...] = x_ref[...]

    x = x_sc[...]                                               # (bt, k) f32, time-major rows

    # Additive attention mask: a row may only attend to keys of the same batch
    # element (row % b == col % b).  Tiny (bt, bt) build, recomputed per layer.
    ri = jax.lax.broadcasted_iota(jnp.int32, (bt, bt), 0)
    ci = jax.lax.broadcasted_iota(jnp.int32, (bt, bt), 1)
    attn_bias = jnp.where((ri % b) == (ci % b), 0.0, NEG_INF).astype(f32)

    # ---- fused QKV projection: one wide (bt,k)@(k,3hk) bf16 matmul ----------
    qkv = jnp.dot(x.astype(bf16), wqkv_ref[...], preferred_element_type=f32)   # (bt, 3hk)
    q = qkv[:, 0 * hk:1 * hk]        # 1/sqrt(k) scale already folded into the weight
    kk = qkv[:, 1 * hk:2 * hk]
    v = qkv[:, 2 * hk:3 * hk]

    # ---- attention: heads statically unrolled, batch folded into rows -------
    ohs = []
    for h in range(heads):
        sl = slice(h * k, (h + 1) * k)
        s = jax.lax.dot_general(q[:, sl], kk[:, sl],
                                (((1,), (1,)), ((), ())),
                                preferred_element_type=f32)      # (bt, bt), f32
        s = s + attn_bias
        s = s - jnp.max(s, axis=-1, keepdims=True)
        p = jnp.exp(s)
        p = p * pl.reciprocal(jnp.sum(p, axis=-1, keepdims=True), approx=True)
        ohs.append(jnp.dot(p, v[:, sl], preferred_element_type=f32))  # (bt, k)
    # Single unifyheads matmul with K = heads*k depth fill.
    o_heads = jnp.concatenate(ohs, axis=1)                        # (bt, hk)
    att = jnp.dot(o_heads.astype(bf16), wu_ref[...], preferred_element_type=f32)  # (bt, k)

    # ---- packed small params for this layer (single f32 slab) ---------------
    sm = small_ref[...]                                           # (8, 4k)
    bu = sm[0:1, :k]
    g1 = sm[1:2, :k]
    be1 = sm[2:3, :k]
    b1 = sm[3:4, :]
    b2 = sm[4:5, :k]
    g2 = sm[5:6, :k]
    be2 = sm[6:7, :k]

    x1 = _layernorm(att + bu + x, g1, be1)                        # norm1(att(x) + x)
    hid = jnp.maximum(
        jnp.dot(x1.astype(bf16), w1_ref[...], preferred_element_type=f32) + b1, 0.0)
    mlp = jnp.dot(hid.astype(bf16), w2_ref[...], preferred_element_type=f32) + b2
    x_out = _layernorm(mlp + x1, g2, be2)                         # norm2(fc(x1) + x1)
    x_sc[...] = x_out

    # ---- classification head on the last layer only -------------------------
    @pl.when(l == num_layers - 1)
    def _():
        # x.view(b, t*k): time-major rows make each per-timestep (b, k) group a
        # contiguous row slab; concatenate them along lanes -> (b, t*k), then
        # a single K=512 matmul against the flat head weight.
        xflat = jnp.concatenate(
            [x_out[ti * b:(ti + 1) * b, :] for ti in range(t)], axis=1)      # (b, t*k)
        hidden = jnp.maximum(
            jnp.dot(xflat.astype(bf16), hw1_ref[...], preferred_element_type=f32)
            + hb1_ref[...], 0.0)                                              # (b, 256)
        o_ref[...] = (jnp.dot(hidden, hw2_ref[...], preferred_element_type=f32)
                      + hb2_ref[...])


# ----------------------------------------------------------------------------
# Parameters (already packed / fused in the layout the kernel expects).
# ----------------------------------------------------------------------------
def build_params(key, *, emb_dim, heads, num_layers, seq_length, num_tokens,
                 num_classes, head_hidden=256):
    k = emb_dim
    hk = heads * k
    assert seq_length * k == 512, "out_block expects flatten size 512 (= seq_length * emb_dim)"

    keys = iter(jax.random.split(key, 2 + num_layers * 6 + 2))
    std = 0.02
    nrm = lambda kk_, shape: jax.random.normal(kk_, shape, jnp.float32) * std
    inv_sqrt_k = 1.0 / (k ** 0.5)

    token_emb = nrm(next(keys), (num_tokens, k))
    pos_emb = nrm(next(keys), (seq_length, k))

    wqkv, wu, w1, w2, small = [], [], [], [], []
    for _ in range(num_layers):
        wq = nrm(next(keys), (k, hk)) * inv_sqrt_k   # fold (q/k^.25)(k/k^.25)^T scale into Q
        wk = nrm(next(keys), (k, hk))
        wv = nrm(next(keys), (k, hk))
        wqkv.append(jnp.concatenate([wq, wk, wv], axis=1).astype(jnp.bfloat16))  # (k, 3hk)
        wu.append(nrm(next(keys), (hk, k)).astype(jnp.bfloat16))
        w1.append(nrm(next(keys), (k, 4 * k)).astype(jnp.bfloat16))
        w2.append(nrm(next(keys), (4 * k, k)).astype(jnp.bfloat16))
        # pack bu, ln1_g, ln1_b, fc1_b, fc2_b, ln2_g, ln2_b into one (8, 4k) f32 slab
        sm = jnp.zeros((8, 4 * k), jnp.float32)
        sm = sm.at[1, :k].set(1.0)   # norm1 gamma
        sm = sm.at[5, :k].set(1.0)   # norm2 gamma
        small.append(sm)

    return {
        "token_emb": token_emb,                                    # f32 (num_tokens, k)
        "pos_emb": pos_emb,                                        # f32 (seq, k)
        "wqkv": jnp.stack(wqkv),                                   # bf16 (L, k, 3hk)
        "wu": jnp.stack(wu),                                       # bf16 (L, hk, k)
        "w1": jnp.stack(w1),                                       # bf16 (L, k, 4k)
        "w2": jnp.stack(w2),                                       # bf16 (L, 4k, k)
        "small": jnp.stack(small),                                 # f32  (L, 8, 4k)
        "hw1": nrm(next(keys), (seq_length * k, head_hidden)).astype(jnp.bfloat16),  # (512, 256)
        "hb1": jnp.zeros((1, head_hidden), jnp.float32),
        "hw2": nrm(next(keys), (head_hidden, num_classes)),        # f32 (256, nc)
        "hb2": jnp.zeros((1, num_classes), jnp.float32),
    }


# ----------------------------------------------------------------------------
# Forward pass: JAX glue (embedding gather, positional add, row packing) plus
# one pallas_call gridded over encoder layers.
# ----------------------------------------------------------------------------
def transformer_forward(params, tokens, *, heads):
    b, t = tokens.shape
    k = params["token_emb"].shape[1]
    num_layers = params["wqkv"].shape[0]
    num_classes = params["hw2"].shape[1]
    head_hidden = params["hw1"].shape[1]
    hk = heads * k
    bt = b * t

    # Embedding gather + positional add (integer gather stays in plain JAX).
    x = jnp.take(params["token_emb"], tokens, axis=0) + params["pos_emb"][None, :t, :]
    # time-major packing: row r = ti * b + bi  -> the whole batch is one 2-D slab.
    x2 = jnp.transpose(x, (1, 0, 2)).reshape(t * b, k)

    kernel = functools.partial(model_kernel, b=b, t=t, k=k, heads=heads,
                               num_layers=num_layers)

    grid_spec = pltpu.PrefetchScalarGridSpec(
        num_scalar_prefetch=0,
        grid=(num_layers,),
        in_specs=[
            pl.BlockSpec((bt, k), lambda l: (0, 0)),                 # x2 (resident)
            pl.BlockSpec((None, k, 3 * hk), lambda l: (l, 0, 0)),    # wqkv (per-layer, dbl-buffered)
            pl.BlockSpec((None, hk, k), lambda l: (l, 0, 0)),        # wu
            pl.BlockSpec((None, k, 4 * k), lambda l: (l, 0, 0)),     # w1
            pl.BlockSpec((None, 4 * k, k), lambda l: (l, 0, 0)),     # w2
            pl.BlockSpec((None, 8, 4 * k), lambda l: (l, 0, 0)),     # small slab
            pl.BlockSpec((t * k, head_hidden), lambda l: (0, 0)),    # hw1 (resident)
            pl.BlockSpec((1, head_hidden), lambda l: (0, 0)),        # hb1
            pl.BlockSpec((head_hidden, num_classes), lambda l: (0, 0)),  # hw2
            pl.BlockSpec((1, num_classes), lambda l: (0, 0)),        # hb2
        ],
        out_specs=pl.BlockSpec((b, num_classes), lambda l: (0, 0)),
        scratch_shapes=[pltpu.VMEM((bt, k), jnp.float32)],           # persistent x carry
    )

    return pl.pallas_call(
        kernel,
        out_shape=jax.ShapeDtypeStruct((b, num_classes), jnp.float32),
        grid_spec=grid_spec,
        compiler_params=pltpu.CompilerParams(dimension_semantics=("arbitrary",)),
    )(x2, params["wqkv"], params["wu"], params["w1"], params["w2"],
      params["small"], params["hw1"], params["hb1"], params["hw2"],
      params["hb2"])


if __name__ == "__main__":
    # Small config consistent with the module: flatten size t*k must equal 512.
    emb_dim = 64
    heads = 4
    num_encoder_layers = 2
    seq_length = 8
    num_tokens = 32
    num_classes = 10
    batch = 2

    key = jax.random.PRNGKey(0)
    pkey, dkey = jax.random.split(key)
    params = build_params(pkey, emb_dim=emb_dim, heads=heads,
                          num_layers=num_encoder_layers, seq_length=seq_length,
                          num_tokens=num_tokens, num_classes=num_classes)
    tokens = jax.random.randint(dkey, (batch, seq_length), 0, num_tokens,
                                dtype=jnp.int32)

    fwd = jax.jit(functools.partial(transformer_forward, heads=heads))
    out = jax.block_until_ready(fwd(params, tokens))
    assert out.shape == (batch, num_classes), out.shape
    print("KERNEL_OK")
</pallas_src>

<mosaic_0001>
module attributes {stable_mosaic.version = 11 : i64} {
  func.func @model_kernel(%arg0: i32, %arg1: memref<16x64xf32, #tpu.memory_space<vmem>>, %arg2: memref<1x64x768xbf16, #tpu.memory_space<vmem>>, %arg3: memref<1x256x64xbf16, #tpu.memory_space<vmem>>, %arg4: memref<1x64x256xbf16, #tpu.memory_space<vmem>>, %arg5: memref<1x256x64xbf16, #tpu.memory_space<vmem>>, %arg6: memref<1x8x256xf32, #tpu.memory_space<vmem>>, %arg7: memref<512x256xbf16, #tpu.memory_space<vmem>>, %arg8: memref<1x256xf32, #tpu.memory_space<vmem>>, %arg9: memref<256x10xf32, #tpu.memory_space<vmem>>, %arg10: memref<1x10xf32, #tpu.memory_space<vmem>>, %arg11: memref<2x10xf32, #tpu.memory_space<vmem>>, %arg12: memref<16x64xf32, #tpu.memory_space<vmem>>) attributes {dimension_semantics = [#tpu.dimension_semantics<arbitrary>], iteration_bounds = array<i64: 2>, scalar_prefetch = 0 : i64, scratch_operands = 1 : i64, tpu.core_type = #tpu.core_type<tc>, window_params = [{pipeline_mode = #tpu.pipeline_mode<synchronous>, transform_indices = @transform_0, window_bounds = array<i64: 16, 64>}, {transform_indices = @transform_1, window_bounds = array<i64: 1, 64, 768>}, {transform_indices = @transform_2, window_bounds = array<i64: 1, 256, 64>}, {transform_indices = @transform_3, window_bounds = array<i64: 1, 64, 256>}, {transform_indices = @transform_4, window_bounds = array<i64: 1, 256, 64>}, {transform_indices = @transform_5, window_bounds = array<i64: 1, 8, 256>}, {pipeline_mode = #tpu.pipeline_mode<synchronous>, transform_indices = @transform_6, window_bounds = array<i64: 512, 256>}, {pipeline_mode = #tpu.pipeline_mode<synchronous>, transform_indices = @transform_7, window_bounds = array<i64: 1, 256>}, {pipeline_mode = #tpu.pipeline_mode<synchronous>, transform_indices = @transform_8, window_bounds = array<i64: 256, 10>}, {pipeline_mode = #tpu.pipeline_mode<synchronous>, transform_indices = @transform_9, window_bounds = array<i64: 1, 10>}, {pipeline_mode = #tpu.pipeline_mode<synchronous>, transform_indices = @transform_10, window_bounds = array<i64: 2, 10>}]} {
    %c0_i32 = arith.constant 0 : i32
    %0 = arith.cmpi eq, %arg0, %c0_i32 : i32
    %1 = arith.extui %0 : i1 to i32
    %c0_i32_0 = arith.constant 0 : i32
    %2 = arith.cmpi ne, %1, %c0_i32_0 : i32
    scf.if %2 {
      %c0_63 = arith.constant 0 : index
      %c0_64 = arith.constant 0 : index
      %193 = vector.load %arg1[%c0_63, %c0_64] : memref<16x64xf32, #tpu.memory_space<vmem>>, vector<16x64xf32>
      %c0_65 = arith.constant 0 : index
      %c0_66 = arith.constant 0 : index
      %194 = vector.load %arg12[%c0_65, %c0_66] : memref<16x64xf32, #tpu.memory_space<vmem>>, vector<16x64xf32>
      tpu.vector_store %arg12[%c0_65, %c0_66], %193 {strides = array<i32>} : memref<16x64xf32, #tpu.memory_space<vmem>>, vector<16x64xf32>,
    } else {
    }
    %c0 = arith.constant 0 : index
    %c0_1 = arith.constant 0 : index
    %3 = vector.load %arg12[%c0, %c0_1] : memref<16x64xf32, #tpu.memory_space<vmem>>, vector<16x64xf32>
    %4 = tpu.iota {dimensions = array<i32: 0>} : vector<16x16xi32>
    %5 = tpu.iota {dimensions = array<i32: 1>} : vector<16x16xi32>
    %c2_i32 = arith.constant 2 : i32
    %c0_i32_2 = arith.constant 0 : i32
    %6 = arith.cmpi eq, %c2_i32, %c0_i32_2 : i32
    %c1_i32 = arith.constant 1 : i32
    %7 = arith.select %6, %c1_i32, %c2_i32 : i32
    %8 = vector.broadcast %7 : i32 to vector<16x16xi32>
    %9 = arith.remsi %4, %8 : vector<16x16xi32>
    %c0_i32_3 = arith.constant 0 : i32
    %10 = vector.broadcast %c0_i32_3 : i32 to vector<16x16xi32>
    %11 = arith.cmpi ne, %9, %10 : vector<16x16xi32>
    %c0_i32_4 = arith.constant 0 : i32
    %12 = vector.broadcast %c0_i32_4 : i32 to vector<16x16xi32>
    %13 = arith.cmpi slt, %9, %12 : vector<16x16xi32>
    %c0_i32_5 = arith.constant 0 : i32
    %14 = arith.cmpi slt, %7, %c0_i32_5 : i32
    %15 = vector.broadcast %14 : i1 to vector<16x16xi1>
    %16 = vector.broadcast %15 : vector<16x16xi1> to vector<16x16xi1>
    %17 = arith.xori %13, %16 : vector<16x16xi1>
    %18 = arith.andi %17, %11 : vector<16x16xi1>
    %19 = vector.broadcast %7 : i32 to vector<16x16xi32>
    %20 = arith.addi %9, %19 : vector<16x16xi32>
    %21 = arith.select %18, %20, %9 : vector<16x16xi1>, vector<16x16xi32>
    %c2_i32_6 = arith.constant 2 : i32
    %c0_i32_7 = arith.constant 0 : i32
    %22 = arith.cmpi eq, %c2_i32_6, %c0_i32_7 : i32
    %c1_i32_8 = arith.constant 1 : i32
    %23 = arith.select %22, %c1_i32_8, %c2_i32_6 : i32
    %24 = vector.broadcast %23 : i32 to vector<16x16xi32>
    %25 = arith.remsi %5, %24 : vector<16x16xi32>
    %c0_i32_9 = arith.constant 0 : i32
    %26 = vector.broadcast %c0_i32_9 : i32 to vector<16x16xi32>
    %27 = arith.cmpi ne, %25, %26 : vector<16x16xi32>
    %c0_i32_10 = arith.constant 0 : i32
    %28 = vector.broadcast %c0_i32_10 : i32 to vector<16x16xi32>
    %29 = arith.cmpi slt, %25, %28 : vector<16x16xi32>
    %c0_i32_11 = arith.constant 0 : i32
    %30 = arith.cmpi slt, %23, %c0_i32_11 : i32
    %31 = vector.broadcast %30 : i1 to vector<16x16xi1>
    %32 = vector.broadcast %31 : vector<16x16xi1> to vector<16x16xi1>
    %33 = arith.xori %29, %32 : vector<16x16xi1>
    %34 = arith.andi %33, %27 : vector<16x16xi1>
    %35 = vector.broadcast %23 : i32 to vector<16x16xi32>
    %36 = arith.addi %25, %35 : vector<16x16xi32>
    %37 = arith.select %34, %36, %25 : vector<16x16xi1>, vector<16x16xi32>
    %38 = arith.cmpi eq, %21, %37 : vector<16x16xi32>
    %cst = arith.constant 0.000000e+00 : f32
    %cst_12 = arith.constant -1.000000e+30 : f32
    %39 = vector.broadcast %cst : f32 to vector<16x16xf32>
    %40 = vector.broadcast %cst_12 : f32 to vector<16x16xf32>
    %41 = arith.select %38, %39, %40 : vector<16x16xi1>, vector<16x16xf32>
    %42 = arith.truncf %3 : vector<16x64xf32> to vector<16x64xbf16>
    %c0_13 = arith.constant 0 : index
    %c0_14 = arith.constant 0 : index
    %c0_15 = arith.constant 0 : index
    %43 = vector.load %arg2[%c0_13, %c0_14, %c0_15] : memref<1x64x768xbf16, #tpu.memory_space<vmem>>, vector<1x64x768xbf16>
    %44 = vector.shape_cast %43 : vector<1x64x768xbf16> to vector<64x768xbf16>
    %cst_16 = arith.constant dense<0.000000e+00> : vector<16x768xf32>
    %45 = tpu.matmul %42, %44, %cst_16 {dimension_numbers = #tpu.dot_dimension_numbers<[1], [0], [0], [1], [0, 0, 1, 1], [], []>} : vector<16x64xbf16>, vector<64x768xbf16>, vector<16x768xf32> -> vector<16x768xf32>
    %46 = vector.extract_strided_slice %45 {offsets = [0, 0], sizes = [16, 256], strides = [1, 1]} : vector<16x768xf32> to vector<16x256xf32>
    %47 = vector.extract_strided_slice %45 {offsets = [0, 256], sizes = [16, 256], strides = [1, 1]} : vector<16x768xf32> to vector<16x256xf32>
    %48 = vector.extract_strided_slice %45 {offsets = [0, 512], sizes = [16, 256], strides = [1, 1]} : vector<16x768xf32> to vector<16x256xf32>
    %49 = vector.extract_strided_slice %46 {offsets = [0, 0], sizes = [16, 64], strides = [1, 1]} : vector<16x256xf32> to vector<16x64xf32>
    %50 = vector.extract_strided_slice %47 {offsets = [0, 0], sizes = [16, 64], strides = [1, 1]} : vector<16x256xf32> to vector<16x64xf32>
    %cst_17 = arith.constant dense<0.000000e+00> : vector<16x16xf32>
    %51 = tpu.matmul %49, %50, %cst_17 {dimension_numbers = #tpu.dot_dimension_numbers<[1], [1], [0], [0], [0, 0, 1, 0], [], []>} : vector<16x64xf32>, vector<16x64xf32>, vector<16x16xf32> -> vector<16x16xf32>
    %52 = arith.addf %51, %41 : vector<16x16xf32>
    %cst_18 = arith.constant dense<0xFF800000> : vector<16xf32>
    %53 = vector.multi_reduction <maximumf>, %52, %cst_18 [1] : vector<16x16xf32> to vector<16xf32>
    %54 = vector.shape_cast %53 : vector<16xf32> to vector<16x1xf32>
    %55 = vector.broadcast %54 : vector<16x1xf32> to vector<16x16xf32>
    %56 = arith.subf %52, %55 : vector<16x16xf32>
    %57 = math.exp %56 : vector<16x16xf32>
    %cst_19 = arith.constant dense<0.000000e+00> : vector<16xf32>
    %58 = vector.multi_reduction <add>, %57, %cst_19 [1] : vector<16x16xf32> to vector<16xf32>
    %59 = vector.shape_cast %58 : vector<16xf32> to vector<16x1xf32>
    %60 = tpu.reciprocal %59 {approx = true} : vector<16x1xf32> -> vector<16x1xf32>
    %61 = vector.broadcast %60 : vector<16x1xf32> to vector<16x16xf32>
    %62 = arith.mulf %57, %61 : vector<16x16xf32>
    %63 = vector.extract_strided_slice %48 {offsets = [0, 0], sizes = [16, 64], strides = [1, 1]} : vector<16x256xf32> to vector<16x64xf32>
    %cst_20 = arith.constant dense<0.000000e+00> : vector<16x64xf32>
    %64 = tpu.matmul %62, %63, %cst_20 {dimension_numbers = #tpu.dot_dimension_numbers<[1], [0], [0], [1], [0, 0, 1, 1], [], []>} : vector<16x16xf32>, vector<16x64xf32>, vector<16x64xf32> -> vector<16x64xf32>
    %65 = vector.extract_strided_slice %46 {offsets = [0, 64], sizes = [16, 64], strides = [1, 1]} : vector<16x256xf32> to vector<16x64xf32>
    %66 = vector.extract_strided_slice %47 {offsets = [0, 64], sizes = [16, 64], strides = [1, 1]} : vector<16x256xf32> to vector<16x64xf32>
    %cst_21 = arith.constant dense<0.000000e+00> : vector<16x16xf32>
    %67 = tpu.matmul %65, %66, %cst_21 {dimension_numbers = #tpu.dot_dimension_numbers<[1], [1], [0], [0], [0, 0, 1, 0], [], []>} : vector<16x64xf32>, vector<16x64xf32>, vector<16x16xf32> -> vector<16x16xf32>
    %68 = arith.addf %67, %41 : vector<16x16xf32>
    %cst_22 = arith.constant dense<0xFF800000> : vector<16xf32>
    %69 = vector.multi_reduction <maximumf>, %68, %cst_22 [1] : vector<16x16xf32> to vector<16xf32>
    %70 = vector.shape_cast %69 : vector<16xf32> to vector<16x1xf32>
    %71 = vector.broadcast %70 : vector<16x1xf32> to vector<16x16xf32>
    %72 = arith.subf %68, %71 : vector<16x16xf32>
    %73 = math.exp %72 : vector<16x16xf32>
    %cst_23 = arith.constant dense<0.000000e+00> : vector<16xf32>
    %74 = vector.multi_reduction <add>, %73, %cst_23 [1] : vector<16x16xf32> to vector<16xf32>
    %75 = vector.shape_cast %74 : vector<16xf32> to vector<16x1xf32>
    %76 = tpu.reciprocal %75 {approx = true} : vector<16x1xf32> -> vector<16x1xf32>
    %77 = vector.broadcast %76 : vector<16x1xf32> to vector<16x16xf32>
    %78 = arith.mulf %73, %77 : vector<16x16xf32>
    %79 = vector.extract_strided_slice %48 {offsets = [0, 64], sizes = [16, 64], strides = [1, 1]} : vector<16x256xf32> to vector<16x64xf32>
    %cst_24 = arith.constant dense<0.000000e+00> : vector<16x64xf32>
    %80 = tpu.matmul %78, %79, %cst_24 {dimension_numbers = #tpu.dot_dimension_numbers<[1], [0], [0], [1], [0, 0, 1, 1], [], []>} : vector<16x16xf32>, vector<16x64xf32>, vector<16x64xf32> -> vector<16x64xf32>
    %81 = vector.extract_strided_slice %46 {offsets = [0, 128], sizes = [16, 64], strides = [1, 1]} : vector<16x256xf32> to vector<16x64xf32>
    %82 = vector.extract_strided_slice %47 {offsets = [0, 128], sizes = [16, 64], strides = [1, 1]} : vector<16x256xf32> to vector<16x64xf32>
    %cst_25 = arith.constant dense<0.000000e+00> : vector<16x16xf32>
    %83 = tpu.matmul %81, %82, %cst_25 {dimension_numbers = #tpu.dot_dimension_numbers<[1], [1], [0], [0], [0, 0, 1, 0], [], []>} : vector<16x64xf32>, vector<16x64xf32>, vector<16x16xf32> -> vector<16x16xf32>
    %84 = arith.addf %83, %41 : vector<16x16xf32>
    %cst_26 = arith.constant dense<0xFF800000> : vector<16xf32>
    %85 = vector.multi_reduction <maximumf>, %84, %cst_26 [1] : vector<16x16xf32> to vector<16xf32>
    %86 = vector.shape_cast %85 : vector<16xf32> to vector<16x1xf32>
    %87 = vector.broadcast %86 : vector<16x1xf32> to vector<16x16xf32>
    %88 = arith.subf %84, %87 : vector<16x16xf32>
    %89 = math.exp %88 : vector<16x16xf32>
    %cst_27 = arith.constant dense<0.000000e+00> : vector<16xf32>
    %90 = vector.multi_reduction <add>, %89, %cst_27 [1] : vector<16x16xf32> to vector<16xf32>
    %91 = vector.shape_cast %90 : vector<16xf32> to vector<16x1xf32>
    %92 = tpu.reciprocal %91 {approx = true} : vector<16x1xf32> -> vector<16x1xf32>
    %93 = vector.broadcast %92 : vector<16x1xf32> to vector<16x16xf32>
    %94 = arith.mulf %89, %93 : vector<16x16xf32>
    %95 = vector.extract_strided_slice %48 {offsets = [0, 128], sizes = [16, 64], strides = [1, 1]} : vector<16x256xf32> to vector<16x64xf32>
    %cst_28 = arith.constant dense<0.000000e+00> : vector<16x64xf32>
    %96 = tpu.matmul %94, %95, %cst_28 {dimension_numbers = #tpu.dot_dimension_numbers<[1], [0], [0], [1], [0, 0, 1, 1], [], []>} : vector<16x16xf32>, vector<16x64xf32>, vector<16x64xf32> -> vector<16x64xf32>
    %97 = vector.extract_strided_slice %46 {offsets = [0, 192], sizes = [16, 64], strides = [1, 1]} : vector<16x256xf32> to vector<16x64xf32>
    %98 = vector.extract_strided_slice %47 {offsets = [0, 192], sizes = [16, 64], strides = [1, 1]} : vector<16x256xf32> to vector<16x64xf32>
    %cst_29 = arith.constant dense<0.000000e+00> : vector<16x16xf32>
    %99 = tpu.matmul %97, %98, %cst_29 {dimension_numbers = #tpu.dot_dimension_numbers<[1], [1], [0], [0], [0, 0, 1, 0], [], []>} : vector<16x64xf32>, vector<16x64xf32>, vector<16x16xf32> -> vector<16x16xf32>
    %100 = arith.addf %99, %41 : vector<16x16xf32>
    %cst_30 = arith.constant dense<0xFF800000> : vector<16xf32>
    %101 = vector.multi_reduction <maximumf>, %100, %cst_30 [1] : vector<16x16xf32> to vector<16xf32>
    %102 = vector.shape_cast %101 : vector<16xf32> to vector<16x1xf32>
    %103 = vector.broadcast %102 : vector<16x1xf32> to vector<16x16xf32>
    %104 = arith.subf %100, %103 : vector<16x16xf32>
    %105 = math.exp %104 : vector<16x16xf32>
    %cst_31 = arith.constant dense<0.000000e+00> : vector<16xf32>
    %106 = vector.multi_reduction <add>, %105, %cst_31 [1] : vector<16x16xf32> to vector<16xf32>
    %107 = vector.shape_cast %106 : vector<16xf32> to vector<16x1xf32>
    %108 = tpu.reciprocal %107 {approx = true} : vector<16x1xf32> -> vector<16x1xf32>
    %109 = vector.broadcast %108 : vector<16x1xf32> to vector<16x16xf32>
    %110 = arith.mulf %105, %109 : vector<16x16xf32>
    %111 = vector.extract_strided_slice %48 {offsets = [0, 192], sizes = [16, 64], strides = [1, 1]} : vector<16x256xf32> to vector<16x64xf32>
    %cst_32 = arith.constant dense<0.000000e+00> : vector<16x64xf32>
    %112 = tpu.matmul %110, %111, %cst_32 {dimension_numbers = #tpu.dot_dimension_numbers<[1], [0], [0], [1], [0, 0, 1, 1], [], []>} : vector<16x16xf32>, vector<16x64xf32>, vector<16x64xf32> -> vector<16x64xf32>
    %113 = tpu.concatenate %64, %80, %96, %112 in 1 : vector<16x64xf32>, vector<16x64xf32>, vector<16x64xf32>, vector<16x64xf32> -> vector<16x256xf32>
    %114 = arith.truncf %113 : vector<16x256xf32> to vector<16x256xbf16>
    %c0_33 = arith.constant 0 : index
    %c0_34 = arith.constant 0 : index
    %c0_35 = arith.constant 0 : index
    %115 = vector.load %arg3[%c0_33, %c0_34, %c0_35] : memref<1x256x64xbf16, #tpu.memory_space<vmem>>, vector<1x256x64xbf16>
    %116 = vector.shape_cast %115 : vector<1x256x64xbf16> to vector<256x64xbf16>
    %cst_36 = arith.constant dense<0.000000e+00> : vector<16x64xf32>
    %117 = tpu.matmul %114, %116, %cst_36 {dimension_numbers = #tpu.dot_dimension_numbers<[1], [0], [0], [1], [0, 0, 1, 1], [], []>} : vector<16x256xbf16>, vector<256x64xbf16>, vector<16x64xf32> -> vector<16x64xf32>
    %c0_37 = arith.constant 0 : index
    %c0_38 = arith.constant 0 : index
    %c0_39 = arith.constant 0 : index
    %118 = vector.load %arg6[%c0_37, %c0_38, %c0_39] : memref<1x8x256xf32, #tpu.memory_space<vmem>>, vector<1x8x256xf32>
    %119 = vector.shape_cast %118 : vector<1x8x256xf32> to vector<8x256xf32>
    %120 = vector.extract_strided_slice %119 {offsets = [0, 0], sizes = [1, 64], strides = [1, 1]} : vector<8x256xf32> to vector<1x64xf32>
    %121 = vector.extract_strided_slice %119 {offsets = [1, 0], sizes = [1, 64], strides = [1, 1]} : vector<8x256xf32> to vector<1x64xf32>
    %122 = vector.extract_strided_slice %119 {offsets = [2, 0], sizes = [1, 64], strides = [1, 1]} : vector<8x256xf32> to vector<1x64xf32>
    %123 = vector.extract_strided_slice %119 {offsets = [3, 0], sizes = [1, 256], strides = [1, 1]} : vector<8x256xf32> to vector<1x256xf32>
    %124 = vector.extract_strided_slice %119 {offsets = [4, 0], sizes = [1, 64], strides = [1, 1]} : vector<8x256xf32> to vector<1x64xf32>
    %125 = vector.extract_strided_slice %119 {offsets = [5, 0], sizes = [1, 64], strides = [1, 1]} : vector<8x256xf32> to vector<1x64xf32>
    %126 = vector.extract_strided_slice %119 {offsets = [6, 0], sizes = [1, 64], strides = [1, 1]} : vector<8x256xf32> to vector<1x64xf32>
    %127 = vector.broadcast %120 : vector<1x64xf32> to vector<16x64xf32>
    %128 = arith.addf %117, %127 : vector<16x64xf32>
    %129 = arith.addf %128, %3 : vector<16x64xf32>
    %cst_40 = arith.constant dense<0.000000e+00> : vector<16xf32>
    %130 = vector.multi_reduction <add>, %129, %cst_40 [1] : vector<16x64xf32> to vector<16xf32>
    %131 = vector.shape_cast %130 : vector<16xf32> to vector<16x1xf32>
    %cst_41 = arith.constant 6.400000e+01 : f32
    %132 = vector.broadcast %cst_41 : f32 to vector<16x1xf32>
    %133 = arith.divf %131, %132 : vector<16x1xf32>
    %134 = vector.broadcast %133 : vector<16x1xf32> to vector<16x64xf32>
    %135 = arith.subf %129, %134 : vector<16x64xf32>
    %136 = arith.mulf %135, %135 : vector<16x64xf32>
    %cst_42 = arith.constant dense<0.000000e+00> : vector<16xf32>
    %137 = vector.multi_reduction <add>, %136, %cst_42 [1] : vector<16x64xf32> to vector<16xf32>
    %138 = vector.shape_cast %137 : vector<16xf32> to vector<16x1xf32>
    %cst_43 = arith.constant 6.400000e+01 : f32
    %139 = vector.broadcast %cst_43 : f32 to vector<16x1xf32>
    %140 = arith.divf %138, %139 : vector<16x1xf32>
    %141 = vector.broadcast %133 : vector<16x1xf32> to vector<16x64xf32>
    %142 = arith.subf %129, %141 : vector<16x64xf32>
    %cst_44 = arith.constant 9.99999974E-6 : f32
    %143 = vector.broadcast %cst_44 : f32 to vector<16x1xf32>
    %144 = arith.addf %140, %143 : vector<16x1xf32>
    %145 = math.rsqrt %144 : vector<16x1xf32>
    %146 = vector.broadcast %145 : vector<16x1xf32> to vector<16x64xf32>
    %147 = arith.mulf %142, %146 : vector<16x64xf32>
    %148 = vector.broadcast %121 : vector<1x64xf32> to vector<16x64xf32>
    %149 = arith.mulf %147, %148 : vector<16x64xf32>
    %150 = vector.broadcast %122 : vector<1x64xf32> to vector<16x64xf32>
    %151 = arith.addf %149, %150 : vector<16x64xf32>
    %152 = arith.truncf %151 : vector<16x64xf32> to vector<16x64xbf16>
    %c0_45 = arith.constant 0 : index
    %c0_46 = arith.constant 0 : index
    %c0_47 = arith.constant 0 : index
    %153 = vector.load %arg4[%c0_45, %c0_46, %c0_47] : memref<1x64x256xbf16, #tpu.memory_space<vmem>>, vector<1x64x256xbf16>
    %154 = vector.shape_cast %153 : vector<1x64x256xbf16> to vector<64x256xbf16>
    %cst_48 = arith.constant dense<0.000000e+00> : vector<16x256xf32>
    %155 = tpu.matmul %152, %154, %cst_48 {dimension_numbers = #tpu.dot_dimension_numbers<[1], [0], [0], [1], [0, 0, 1, 1], [], []>} : vector<16x64xbf16>, vector<64x256xbf16>, vector<16x256xf32> -> vector<16x256xf32>
    %156 = vector.broadcast %123 : vector<1x256xf32> to vector<16x256xf32>
    %157 = arith.addf %155, %156 : vector<16x256xf32>
    %cst_49 = arith.constant 0.000000e+00 : f32
    %158 = vector.broadcast %cst_49 : f32 to vector<16x256xf32>
    %159 = arith.maximumf %157, %158 : vector<16x256xf32>
    %160 = arith.truncf %159 : vector<16x256xf32> to vector<16x256xbf16>
    %c0_50 = arith.constant 0 : index
    %c0_51 = arith.constant 0 : index
    %c0_52 = arith.constant 0 : index
    %161 = vector.load %arg5[%c0_50, %c0_51, %c0_52] : memref<1x256x64xbf16, #tpu.memory_space<vmem>>, vector<1x256x64xbf16>
    %162 = vector.shape_cast %161 : vector<1x256x64xbf16> to vector<256x64xbf16>
    %cst_53 = arith.constant dense<0.000000e+00> : vector<16x64xf32>
    %163 = tpu.matmul %160, %162, %cst_53 {dimension_numbers = #tpu.dot_dimension_numbers<[1], [0], [0], [1], [0, 0, 1, 1], [], []>} : vector<16x256xbf16>, vector<256x64xbf16>, vector<16x64xf32> -> vector<16x64xf32>
    %164 = vector.broadcast %124 : vector<1x64xf32> to vector<16x64xf32>
    %165 = arith.addf %163, %164 : vector<16x64xf32>
    %166 = arith.addf %165, %151 : vector<16x64xf32>
    %cst_54 = arith.constant dense<0.000000e+00> : vector<16xf32>
    %167 = vector.multi_reduction <add>, %166, %cst_54 [1] : vector<16x64xf32> to vector<16xf32>
    %168 = vector.shape_cast %167 : vector<16xf32> to vector<16x1xf32>
    %cst_55 = arith.constant 6.400000e+01 : f32
    %169 = vector.broadcast %cst_55 : f32 to vector<16x1xf32>
    %170 = arith.divf %168, %169 : vector<16x1xf32>
    %171 = vector.broadcast %170 : vector<16x1xf32> to vector<16x64xf32>
    %172 = arith.subf %166, %171 : vector<16x64xf32>
    %173 = arith.mulf %172, %172 : vector<16x64xf32>
    %cst_56 = arith.constant dense<0.000000e+00> : vector<16xf32>
    %174 = vector.multi_reduction <add>, %173, %cst_56 [1] : vector<16x64xf32> to vector<16xf32>
    %175 = vector.shape_cast %174 : vector<16xf32> to vector<16x1xf32>
    %cst_57 = arith.constant 6.400000e+01 : f32
    %176 = vector.broadcast %cst_57 : f32 to vector<16x1xf32>
    %177 = arith.divf %175, %176 : vector<16x1xf32>
    %178 = vector.broadcast %170 : vector<16x1xf32> to vector<16x64xf32>
    %179 = arith.subf %166, %178 : vector<16x64xf32>
    %cst_58 = arith.constant 9.99999974E-6 : f32
    %180 = vector.broadcast %cst_58 : f32 to vector<16x1xf32>
    %181 = arith.addf %177, %180 : vector<16x1xf32>
    %182 = math.rsqrt %181 : vector<16x1xf32>
    %183 = vector.broadcast %182 : vector<16x1xf32> to vector<16x64xf32>
    %184 = arith.mulf %179, %183 : vector<16x64xf32>
    %185 = vector.broadcast %125 : vector<1x64xf32> to vector<16x64xf32>
    %186 = arith.mulf %184, %185 : vector<16x64xf32>
    %187 = vector.broadcast %126 : vector<1x64xf32> to vector<16x64xf32>
    %188 = arith.addf %186, %187 : vector<16x64xf32>
    %c0_59 = arith.constant 0 : index
    %c0_60 = arith.constant 0 : index
    %189 = vector.load %arg12[%c0_59, %c0_60] : memref<16x64xf32, #tpu.memory_space<vmem>>, vector<16x64xf32>
    tpu.vector_store %arg12[%c0_59, %c0_60], %188 {strides = array<i32>} : memref<16x64xf32, #tpu.memory_space<vmem>>, vector<16x64xf32>,
    %c1_i32_61 = arith.constant 1 : i32
    %190 = arith.cmpi eq, %arg0, %c1_i32_61 : i32
    %191 = arith.extui %190 : i1 to i32
    %c0_i32_62 = arith.constant 0 : i32
    %192 = arith.cmpi ne, %191, %c0_i32_62 : i32
    scf.if %192 {
      %193 = vector.extract_strided_slice %188 {offsets = [0, 0], sizes = [2, 64], strides = [1, 1]} : vector<16x64xf32> to vector<2x64xf32>
      %194 = vector.extract_strided_slice %188 {offsets = [2, 0], sizes = [2, 64], strides = [1, 1]} : vector<16x64xf32> to vector<2x64xf32>
      %195 = vector.extract_strided_slice %188 {offsets = [4, 0], sizes = [2, 64], strides = [1, 1]} : vector<16x64xf32> to vector<2x64xf32>
      %196 = vector.extract_strided_slice %188 {offsets = [6, 0], sizes = [2, 64], strides = [1, 1]} : vector<16x64xf32> to vector<2x64xf32>
      %197 = vector.extract_strided_slice %188 {offsets = [8, 0], sizes = [2, 64], strides = [1, 1]} : vector<16x64xf32> to vector<2x64xf32>
      %198 = vector.extract_strided_slice %188 {offsets = [10, 0], sizes = [2, 64], strides = [1, 1]} : vector<16x64xf32> to vector<2x64xf32>
      %199 = vector.extract_strided_slice %188 {offsets = [12, 0], sizes = [2, 64], strides = [1, 1]} : vector<16x64xf32> to vector<2x64xf32>
      %200 = vector.extract_strided_slice %188 {offsets = [14, 0], sizes = [2, 64], strides = [1, 1]} : vector<16x64xf32> to vector<2x64xf32>
      %201 = tpu.concatenate %193, %194, %195, %196, %197, %198, %199, %200 in 1 : vector<2x64xf32>, vector<2x64xf32>, vector<2x64xf32>, vector<2x64xf32>, vector<2x64xf32>, vector<2x64xf32>, vector<2x64xf32>, vector<2x64xf32> -> vector<2x512xf32>
      %202 = arith.truncf %201 : vector<2x512xf32> to vector<2x512xbf16>
      %c0_63 = arith.constant 0 : index
      %c0_64 = arith.constant 0 : index
      %203 = vector.load %arg7[%c0_63, %c0_64] : memref<512x256xbf16, #tpu.memory_space<vmem>>, vector<512x256xbf16>
      %cst_65 = arith.constant dense<0.000000e+00> : vector<2x256xf32>
      %204 = tpu.matmul %202, %203, %cst_65 {dimension_numbers = #tpu.dot_dimension_numbers<[1], [0], [0], [1], [0, 0, 1, 1], [], []>} : vector<2x512xbf16>, vector<512x256xbf16>, vector<2x256xf32> -> vector<2x256xf32>
      %c0_66 = arith.constant 0 : index
      %c0_67 = arith.constant 0 : index
      %205 = vector.load %arg8[%c0_66, %c0_67] : memref<1x256xf32, #tpu.memory_space<vmem>>, vector<1x256xf32>
      %206 = vector.broadcast %205 : vector<1x256xf32> to vector<2x256xf32>
      %207 = arith.addf %204, %206 : vector<2x256xf32>
      %cst_68 = arith.constant 0.000000e+00 : f32
      %208 = vector.broadcast %cst_68 : f32 to vector<2x256xf32>
      %209 = arith.maximumf %207, %208 : vector<2x256xf32>
      %c0_69 = arith.constant 0 : index
      %c0_70 = arith.constant 0 : index
      %210 = vector.load %arg9[%c0_69, %c0_70] : memref<256x10xf32, #tpu.memory_space<vmem>>, vector<256x10xf32>
      %cst_71 = arith.constant dense<0.000000e+00> : vector<2x10xf32>
      %211 = tpu.matmul %209, %210, %cst_71 {dimension_numbers = #tpu.dot_dimension_numbers<[1], [0], [0], [1], [0, 0, 1, 1], [], []>} : vector<2x256xf32>, vector<256x10xf32>, vector<2x10xf32> -> vector<2x10xf32>
      %c0_72 = arith.constant 0 : index
      %c0_73 = arith.constant 0 : index
      %212 = vector.load %arg10[%c0_72, %c0_73] : memref<1x10xf32, #tpu.memory_space<vmem>>, vector<1x10xf32>
      %213 = vector.broadcast %212 : vector<1x10xf32> to vector<2x10xf32>
      %214 = arith.addf %211, %213 : vector<2x10xf32>
      %c0_74 = arith.constant 0 : index
      %c0_75 = arith.constant 0 : index
      %215 = vector.load %arg11[%c0_74, %c0_75] : memref<2x10xf32, #tpu.memory_space<vmem>>, vector<2x10xf32>
      tpu.vector_store %arg11[%c0_74, %c0_75], %214 {strides = array<i32>} : memref<2x10xf32, #tpu.memory_space<vmem>>, vector<2x10xf32>,
    } else {
    }
    return
  }
  func.func @transform_0(%arg0: i32) -> (i32, i32) {
    %c0_i32 = arith.constant 0 : i32
    %c0_i32_0 = arith.constant 0 : i32
    %c0_i32_1 = arith.constant 0 : i32
    return %c0_i32, %c0_i32_0 : i32, i32
  }
  func.func @transform_1(%arg0: i32) -> (i32, i32, i32) {
    %c0_i32 = arith.constant 0 : i32
    %c0_i32_0 = arith.constant 0 : i32
    %c0_i32_1 = arith.constant 0 : i32
    return %arg0, %c0_i32, %c0_i32_0 : i32, i32, i32
  }
  func.func @transform_2(%arg0: i32) -> (i32, i32, i32) {
    %c0_i32 = arith.constant 0 : i32
    %c0_i32_0 = arith.constant 0 : i32
    %c0_i32_1 = arith.constant 0 : i32
    return %arg0, %c0_i32, %c0_i32_0 : i32, i32, i32
  }
  func.func @transform_3(%arg0: i32) -> (i32, i32, i32) {
    %c0_i32 = arith.constant 0 : i32
    %c0_i32_0 = arith.constant 0 : i32
    %c0_i32_1 = arith.constant 0 : i32
    return %arg0, %c0_i32, %c0_i32_0 : i32, i32, i32
  }
  func.func @transform_4(%arg0: i32) -> (i32, i32, i32) {
    %c0_i32 = arith.constant 0 : i32
    %c0_i32_0 = arith.constant 0 : i32
    %c0_i32_1 = arith.constant 0 : i32
    return %arg0, %c0_i32, %c0_i32_0 : i32, i32, i32
  }
  func.func @transform_5(%arg0: i32) -> (i32, i32, i32) {
    %c0_i32 = arith.constant 0 : i32
    %c0_i32_0 = arith.constant 0 : i32
    %c0_i32_1 = arith.constant 0 : i32
    return %arg0, %c0_i32, %c0_i32_0 : i32, i32, i32
  }
  func.func @transform_6(%arg0: i32) -> (i32, i32) {
    %c0_i32 = arith.constant 0 : i32
    %c0_i32_0 = arith.constant 0 : i32
    %c0_i32_1 = arith.constant 0 : i32
    return %c0_i32, %c0_i32_0 : i32, i32
  }
  func.func @transform_7(%arg0: i32) -> (i32, i32) {
    %c0_i32 = arith.constant 0 : i32
    %c0_i32_0 = arith.constant 0 : i32
    %c0_i32_1 = arith.constant 0 : i32
    return %c0_i32, %c0_i32_0 : i32, i32
  }
  func.func @transform_8(%arg0: i32) -> (i32, i32) {
    %c0_i32 = arith.constant 0 : i32
    %c0_i32_0 = arith.constant 0 : i32
    %c0_i32_1 = arith.constant 0 : i32
    return %c0_i32, %c0_i32_0 : i32, i32
  }
  func.func @transform_9(%arg0: i32) -> (i32, i32) {
    %c0_i32 = arith.constant 0 : i32
    %c0_i32_0 = arith.constant 0 : i32
    %c0_i32_1 = arith.constant 0 : i32
    return %c0_i32, %c0_i32_0 : i32, i32
  }
  func.func @transform_10(%arg0: i32) -> (i32, i32) {
    %c0_i32 = arith.constant 0 : i32
    %c0_i32_0 = arith.constant 0 : i32
    %c0_i32_1 = arith.constant 0 : i32
    return %c0_i32, %c0_i32_0 : i32, i32
  }
}

</mosaic_0001>

<llo_original>
// kernel: transformer_forward.1
$region0: #{transformer_forward.1}
  #allocation0 [shape = 'u32[]', space=smem, size = 0x4, offset = 0x4, fixed_abs, tag = 'smem constant byte address 0x4 - core index']
  #allocation1 [shape = 'u32[72,128]{1,0:T(1,128)}', space=vmem, size = 0x9000, scoped, tag = 'internal scratch']
  #allocation2 [shape = 'f32[16,64]{1,0:T(8,128)}', space=vmem, size = 0x2000, scoped, tag = 'scratch operand']
  %s0 = inlined_call_operand.vmem [shape: f32[16,64], index: 0, kind: input, shape index: {}]
  %s1 = inlined_call_operand.hbm [shape: bf16[2,64,768], index: 1, kind: input, shape index: {}]
  %s2 = inlined_call_operand.vmem [shape: bf16[2,256,64], index: 2, kind: input, shape index: {}]
  %s3 = inlined_call_operand.vmem [shape: bf16[2,64,256], index: 3, kind: input, shape index: {}]
  %s4 = inlined_call_operand.vmem [shape: bf16[2,256,64], index: 4, kind: input, shape index: {}]
  %s5 = inlined_call_operand.vmem [shape: f32[2,8,256], index: 5, kind: input, shape index: {}]
  %s6 = inlined_call_operand.vmem [shape: bf16[512,256], index: 6, kind: input, shape index: {}]
  %s7 = inlined_call_operand.vmem [shape: f32[1,256], index: 7, kind: input, shape index: {}]
  %s8 = inlined_call_operand.vmem [shape: f32[256,10], index: 8, kind: input, shape index: {}]
  %s9 = inlined_call_operand.vmem [shape: f32[1,10], index: 9, kind: input, shape index: {}]
  %s10 = inlined_call_operand.hbm [shape: f32[2,10], index: 10, kind: output, shape index: {}]
  %s11 = sld [smem:[#allocation0]]
  $region85: #{transformer_forward.1} parent=0
    _
  %s13 = ssub.s32 1, %s11
  %s14 = scalar_select 0, %s13, %s11
  $region1: #{transformer_forward.1} parent=0
    #allocation3 [shape = 'u8[196608]{0}', space=vmem, size = 0x30000, scoped, tag = 'input window, operand 1']
    #allocation4 [shape = 's32[2]{0}', space=sflag, size = 0x8, scoped, tag = 'scoped memory for transformer_forward.1']
    #allocation5 [shape = 's32[2]{0}', space=sflag, size = 0x8, scoped, tag = 'scoped memory for transformer_forward.1']
    #allocation6 [shape = 'u8[1024]{0}', space=vmem, size = 0x400, scoped, tag = 'output window, operand 0, single buffered']
    %15 = vsyncpa [#allocation4], 0
    %s16 = scalar_lea.sflag [#allocation4], 1
    %17 = vsyncpa %s16, 0
    %18 = vsyncpa [#allocation5], 0
    loop: start=0, step=1, limit=4
    $region2: #{transformer_forward.1} parent=1 // loop_pre_header
      _
    $region3: #{transformer_forward.1} parent=1 // loop_header
      %s20 = sphi 0, %s24
      %p21 = scmp.ge.s32.totalorder %s20, 4
      %s28 = sphi 0, %s28
      %s30 = sphi 0, %s28
      %s31 = sphi 0, %s30
      %s45 = sphi 0, %s31
      %s51 = sphi 0, %s53
      %s54 = sphi 0, %s51
      %s55 = sphi 0, %s54
      %s71 = sphi 0, %s55
      %s77 = sphi 0, %s79
      %s80 = sphi 0, %s77
      %s81 = sphi 0, %s80
      %s97 = sphi 0, %s81
      %s103 = sphi 0, %s105
      %s106 = sphi 0, %s103
      %s107 = sphi 0, %s106
      %s123 = sphi 0, %s107
      %s129 = sphi 0, %s131
      %s132 = sphi 0, %s129
      %s133 = sphi 0, %s132
      %s149 = sphi 0, %s133
      %s155 = sphi 0, %s157
      %s158 = sphi 0, %s155
      %s159 = sphi 0, %s158
      %s175 = sphi 0, %s159
      %s179 = sphi 0, %s179
      %s181 = sphi 0, %s179
      %s182 = sphi 0, %s181
      %s196 = sphi 0, %s182
      %s200 = sphi 0, %s200
      %s202 = sphi 0, %s200
      %s203 = sphi 0, %s202
      %s217 = sphi 0, %s203
      %s221 = sphi 0, %s221
      %s223 = sphi 0, %s221
      %s224 = sphi 0, %s223
      %s238 = sphi 0, %s224
      %s242 = sphi 0, %s242
      %s244 = sphi 0, %s242
      %s245 = sphi 0, %s244
      %s259 = sphi 0, %s245
      %s263 = sphi 0, %s263
      %s265 = sphi 0, %s263
      %s266 = sphi 0, %s265
      %s280 = sphi 0, %s266
    $region4: #{transformer_forward.1} parent=1 // loop_header_branch
      %23 = sbr.rel (%p21) target = $region8
    $region5: #{transformer_forward.1} parent=1 // loop_body
      %s25 = ssub.s32 %s20, 1
      %s26 = ssub.s32 %s20, 2
      %s27 = sadd.s32 %s20, 1
      %s29 = sadd.s32 %s28, 1
      %p32 = scmp.eq.s32.totalorder %s20, 1
      %p33 = scmp.ne.s32.totalorder %s28, %s30
      %p34 = scmp.eq.s32.totalorder %s20, 0
      %p35 = por %p33, %p34
      %p36 = scmp.ne.s32.totalorder %s28, %s30
      %p37 = scmp.eq.s32.totalorder %s25, 1
      %p38 = por %p36, %p37
      %p39 = scmp.ne.s32.totalorder %s30, %s31
      %p40 = scmp.eq.s32.totalorder %s25, 0
      %p41 = por %p39, %p40
      %p42 = scmp.ne.s32.totalorder %s30, %s31
      %p43 = scmp.eq.s32.totalorder %s26, 1
      %p44 = por %p42, %p43
      %p46 = scmp.ne.s32.totalorder %s31, %s45
      %p47 = scmp.eq.s32.totalorder %s26, 0
      %p48 = por %p46, %p47
      %s49 = ssub.s32 %s20, %s27
      %p50 = scmp.eq.s32.totalorder %s49, 0
      %s52 = sadd.s32 %s51, 1
      %s53 = scalar_select %p50, %s51, %s52
      %p56 = pneg %p50
      %p57 = scmp.eq.s32.totalorder %s20, 1
      %p58 = por %p56, %p57
      %p59 = scmp.ne.s32.totalorder %s51, %s54
      %p60 = scmp.eq.s32.totalorder %s20, 0
      %p61 = por %p59, %p60
      %p62 = scmp.ne.s32.totalorder %s51, %s54
      %p63 = scmp.eq.s32.totalorder %s25, 1
      %p64 = por %p62, %p63
      %p65 = scmp.ne.s32.totalorder %s54, %s55
      %p66 = scmp.eq.s32.totalorder %s25, 0
      %p67 = por %p65, %p66
      %p68 = scmp.ne.s32.totalorder %s54, %s55
      %p69 = scmp.eq.s32.totalorder %s26, 1
      %p70 = por %p68, %p69
      %p72 = scmp.ne.s32.totalorder %s55, %s71
      %p73 = scmp.eq.s32.totalorder %s26, 0
      %p74 = por %p72, %p73
      %s75 = ssub.s32 %s20, %s27
      %p76 = scmp.eq.s32.totalorder %s75, 0
      %s78 = sadd.s32 %s77, 1
      %s79 = scalar_select %p76, %s77, %s78
      %p82 = pneg %p76
      %p83 = scmp.eq.s32.totalorder %s20, 1
      %p84 = por %p82, %p83
      %p85 = scmp.ne.s32.totalorder %s77, %s80
      %p86 = scmp.eq.s32.totalorder %s20, 0
      %p87 = por %p85, %p86
      %p88 = scmp.ne.s32.totalorder %s77, %s80
      %p89 = scmp.eq.s32.totalorder %s25, 1
      %p90 = por %p88, %p89
      %p91 = scmp.ne.s32.totalorder %s80, %s81
      %p92 = scmp.eq.s32.totalorder %s25, 0
      %p93 = por %p91, %p92
      %p94 = scmp.ne.s32.totalorder %s80, %s81
      %p95 = scmp.eq.s32.totalorder %s26, 1
      %p96 = por %p94, %p95
      %p98 = scmp.ne.s32.totalorder %s81, %s97
      %p99 = scmp.eq.s32.totalorder %s26, 0
      %p100 = por %p98, %p99
      %s101 = ssub.s32 %s20, %s27
      %p102 = scmp.eq.s32.totalorder %s101, 0
      %s104 = sadd.s32 %s103, 1
      %s105 = scalar_select %p102, %s103, %s104
      %p108 = pneg %p102
      %p109 = scmp.eq.s32.totalorder %s20, 1
      %p110 = por %p108, %p109
      %p111 = scmp.ne.s32.totalorder %s103, %s106
      %p112 = scmp.eq.s32.totalorder %s20, 0
      %p113 = por %p111, %p112
      %p114 = scmp.ne.s32.totalorder %s103, %s106
      %p115 = scmp.eq.s32.totalorder %s25, 1
      %p116 = por %p114, %p115
      %p117 = scmp.ne.s32.totalorder %s106, %s107
      %p118 = scmp.eq.s32.totalorder %s25, 0
      %p119 = por %p117, %p118
      %p120 = scmp.ne.s32.totalorder %s106, %s107
      %p121 = scmp.eq.s32.totalorder %s26, 1
      %p122 = por %p120, %p121
      %p124 = scmp.ne.s32.totalorder %s107, %s123
      %p125 = scmp.eq.s32.totalorder %s26, 0
      %p126 = por %p124, %p125
      %s127 = ssub.s32 %s20, %s27
      %p128 = scmp.eq.s32.totalorder %s127, 0
      %s130 = sadd.s32 %s129, 1
      %s131 = scalar_select %p128, %s129, %s130
      %p134 = pneg %p128
      %p135 = scmp.eq.s32.totalorder %s20, 1
      %p136 = por %p134, %p135
      %p137 = scmp.ne.s32.totalorder %s129, %s132
      %p138 = scmp.eq.s32.totalorder %s20, 0
      %p139 = por %p137, %p138
      %p140 = scmp.ne.s32.totalorder %s129, %s132
      %p141 = scmp.eq.s32.totalorder %s25, 1
      %p142 = por %p140, %p141
      %p143 = scmp.ne.s32.totalorder %s132, %s133
      %p144 = scmp.eq.s32.totalorder %s25, 0
      %p145 = por %p143, %p144
      %p146 = scmp.ne.s32.totalorder %s132, %s133
      %p147 = scmp.eq.s32.totalorder %s26, 1
      %p148 = por %p146, %p147
      %p150 = scmp.ne.s32.totalorder %s133, %s149
      %p151 = scmp.eq.s32.totalorder %s26, 0
      %p152 = por %p150, %p151
      %s153 = ssub.s32 %s20, %s27
      %p154 = scmp.eq.s32.totalorder %s153, 0
      %s156 = sadd.s32 %s155, 1
      %s157 = scalar_select %p154, %s155, %s156
      %p160 = pneg %p154
      %p161 = scmp.eq.s32.totalorder %s20, 1
      %p162 = por %p160, %p161
      %p163 = scmp.ne.s32.totalorder %s155, %s158
      %p164 = scmp.eq.s32.totalorder %s20, 0
      %p165 = por %p163, %p164
      %p166 = scmp.ne.s32.totalorder %s155, %s158
      %p167 = scmp.eq.s32.totalorder %s25, 1
      %p168 = por %p166, %p167
      %p169 = scmp.ne.s32.totalorder %s158, %s159
      %p170 = scmp.eq.s32.totalorder %s25, 0
      %p171 = por %p169, %p170
      %p172 = scmp.ne.s32.totalorder %s158, %s159
      %p173 = scmp.eq.s32.totalorder %s26, 1
      %p174 = por %p172, %p173
      %p176 = scmp.ne.s32.totalorder %s159, %s175
      %p177 = scmp.eq.s32.totalorder %s26, 0
      %p178 = por %p176, %p177
      %s180 = sadd.s32 %s179, 1
      %p183 = scmp.eq.s32.totalorder %s20, 1
      %p184 = scmp.ne.s32.totalorder %s179, %s181
      %p185 = scmp.eq.s32.totalorder %s20, 0
      %p186 = por %p184, %p185
      %p187 = scmp.ne.s32.totalorder %s179, %s181
      %p188 = scmp.eq.s32.totalorder %s25, 1
      %p189 = por %p187, %p188
      %p190 = scmp.ne.s32.totalorder %s181, %s182
      %p191 = scmp.eq.s32.totalorder %s25, 0
      %p192 = por %p190, %p191
      %p193 = scmp.ne.s32.totalorder %s181, %s182
      %p194 = scmp.eq.s32.totalorder %s26, 1
      %p195 = por %p193, %p194
      %p197 = scmp.ne.s32.totalorder %s182, %s196
      %p198 = scmp.eq.s32.totalorder %s26, 0
      %p199 = por %p197, %p198
      %s201 = sadd.s32 %s200, 1
      %p204 = scmp.eq.s32.totalorder %s20, 1
      %p205 = scmp.ne.s32.totalorder %s200, %s202
      %p206 = scmp.eq.s32.totalorder %s20, 0
      %p207 = por %p205, %p206
      %p208 = scmp.ne.s32.totalorder %s200, %s202
      %p209 = scmp.eq.s32.totalorder %s25, 1
      %p210 = por %p208, %p209
      %p211 = scmp.ne.s32.totalorder %s202, %s203
      %p212 = scmp.eq.s32.totalorder %s25, 0
      %p213 = por %p211, %p212
      %p214 = scmp.ne.s32.totalorder %s202, %s203
      %p215 = scmp.eq.s32.totalorder %s26, 1
      %p216 = por %p214, %p215
      %p218 = scmp.ne.s32.totalorder %s203, %s217
      %p219 = scmp.eq.s32.totalorder %s26, 0
      %p220 = por %p218, %p219
      %s222 = sadd.s32 %s221, 1
      %p225 = scmp.eq.s32.totalorder %s20, 1
      %p226 = scmp.ne.s32.totalorder %s221, %s223
      %p227 = scmp.eq.s32.totalorder %s20, 0
      %p228 = por %p226, %p227
      %p229 = scmp.ne.s32.totalorder %s221, %s223
      %p230 = scmp.eq.s32.totalorder %s25, 1
      %p231 = por %p229, %p230
      %p232 = scmp.ne.s32.totalorder %s223, %s224
      %p233 = scmp.eq.s32.totalorder %s25, 0
      %p234 = por %p232, %p233
      %p235 = scmp.ne.s32.totalorder %s223, %s224
      %p236 = scmp.eq.s32.totalorder %s26, 1
      %p237 = por %p235, %p236
      %p239 = scmp.ne.s32.totalorder %s224, %s238
      %p240 = scmp.eq.s32.totalorder %s26, 0
      %p241 = por %p239, %p240
      %s243 = sadd.s32 %s242, 1
      %p246 = scmp.eq.s32.totalorder %s20, 1
      %p247 = scmp.ne.s32.totalorder %s242, %s244
      %p248 = scmp.eq.s32.totalorder %s20, 0
      %p249 = por %p247, %p248
      %p250 = scmp.ne.s32.totalorder %s242, %s244
      %p251 = scmp.eq.s32.totalorder %s25, 1
      %p252 = por %p250, %p251
      %p253 = scmp.ne.s32.totalorder %s244, %s245
      %p254 = scmp.eq.s32.totalorder %s25, 0
      %p255 = por %p253, %p254
      %p256 = scmp.ne.s32.totalorder %s244, %s245
      %p257 = scmp.eq.s32.totalorder %s26, 1
      %p258 = por %p256, %p257
      %p260 = scmp.ne.s32.totalorder %s245, %s259
      %p261 = scmp.eq.s32.totalorder %s26, 0
      %p262 = por %p260, %p261
      %s264 = sadd.s32 %s263, 1
      %p267 = scmp.eq.s32.totalorder %s20, 1
      %p268 = scmp.ne.s32.totalorder %s263, %s265
      %p269 = scmp.eq.s32.totalorder %s20, 0
      %p270 = por %p268, %p269
      %p271 = scmp.ne.s32.totalorder %s263, %s265
      %p272 = scmp.eq.s32.totalorder %s25, 1
      %p273 = por %p271, %p272
      %p274 = scmp.ne.s32.totalorder %s265, %s266
      %p275 = scmp.eq.s32.totalorder %s25, 0
      %p276 = por %p274, %p275
      %p277 = scmp.ne.s32.totalorder %s265, %s266
      %p278 = scmp.eq.s32.totalorder %s26, 1
      %p279 = por %p277, %p278
      %p281 = scmp.ne.s32.totalorder %s266, %s280
      %p282 = scmp.eq.s32.totalorder %s26, 0
      %p283 = por %p281, %p282
      %p284 = scmp.le.s32.totalorder 1, %s20
      %p285 = scmp.lt.s32.totalorder %s20, 3
      %p286 = pnand %p284, %p285
      %p287 = pneg %p286
      // Predicated region
      $region9: #{transformer_forward.1} parent=5 // pred_check
        _
      $region10: #{transformer_forward.1} parent=5 // pred_check_branch
        %289 = sbr.rel (%p286) target = $region12
      $region11: #{transformer_forward.1} parent=5 // pred_region
        %s290 = ssub.s32 %s20, 1
        // Predicated region
        $region13: #{transformer_forward.1} parent=11 // pred_check
          %p291 = pneg %p41
        $region14: #{transformer_forward.1} parent=11 // pred_check_branch
          %293 = sbr.rel (%p291) target = $region16
        $region15: #{transformer_forward.1} parent=11 // pred_region
          _
        $region16: #{transformer_forward.1} parent=11 // pred_fallthru
          _
        // Predicated region
        $region17: #{transformer_forward.1} parent=11 // pred_check
          %p294 = pneg %p192
        $region18: #{transformer_forward.1} parent=11 // pred_check_branch
          %296 = sbr.rel (%p294) target = $region20
        $region19: #{transformer_forward.1} parent=11 // pred_region
          _
        $region20: #{transformer_forward.1} parent=11 // pred_fallthru
          _
        // Predicated region
        $region21: #{transformer_forward.1} parent=11 // pred_check
          %p297 = pneg %p213
        $region22: #{transformer_forward.1} parent=11 // pred_check_branch
          %299 = sbr.rel (%p297) target = $region24
        $region23: #{transformer_forward.1} parent=11 // pred_region
          _
        $region24: #{transformer_forward.1} parent=11 // pred_fallthru
          _
        // Predicated region
        $region25: #{transformer_forward.1} parent=11 // pred_check
          %p300 = pneg %p234
        $region26: #{transformer_forward.1} parent=11 // pred_check_branch
          %302 = sbr.rel (%p300) target = $region28
        $region27: #{transformer_forward.1} parent=11 // pred_region
          _
        $region28: #{transformer_forward.1} parent=11 // pred_fallthru
          _
        // Predicated region
        $region29: #{transformer_forward.1} parent=11 // pred_check
          %p303 = pneg %p255
        $region30: #{transformer_forward.1} parent=11 // pred_check_branch
          %305 = sbr.rel (%p303) target = $region32
        $region31: #{transformer_forward.1} parent=11 // pred_region
          _
        $region32: #{transformer_forward.1} parent=11 // pred_fallthru
          _
      $region12: #{transformer_forward.1} parent=5 // pred_fallthru
        _
      %p306 = scmp.lt.s32.totalorder %s20, 2
      // Predicated region
      $region33: #{transformer_forward.1} parent=5 // pred_check
        %p307 = pneg %p306
      $region34: #{transformer_forward.1} parent=5 // pred_check_branch
        %309 = sbr.rel (%p307) target = $region36
      $region35: #{transformer_forward.1} parent=5 // pred_region
        // Predicated region
        $region37: #{transformer_forward.1} parent=35 // pred_check
          %p310 = pneg %p61
        $region38: #{transformer_forward.1} parent=35 // pred_check_branch
          %312 = sbr.rel (%p310) target = $region40
        $region39: #{transformer_forward.1} parent=35 // pred_region
          %s313 = sand.u32 %s51, 1
          %s314 = scalar_lea.sflag [#allocation4], %s313
          %s315 = sand.u32 %s51, 1
          %s316 = smul.addr %s315, 192
          %s317 = scalar_lea.vmem [#allocation3], %s316
          %319 = vsyncadd %s314, 0
          %s320 = smul.addr %s20, 48
          %s321 = smul.addr %s320, 4
          %s322 = scalar_lea.hbm %s1, %s321
          %s323 = sshll.u32 %s322, 4
          %s324 = int_to_ptr.hbm [resolvable:$true] %s323
          %s325 = sshll.u32 %s317, 4
          %s326 = int_to_ptr.vmem [resolvable:$true] %s325
          %331 = dma.hbm_to_vmem [thread:$0]  %s324, 3072, %s326, %s314, 384, 384, 24
        $region40: #{transformer_forward.1} parent=35 // pred_fallthru
          _
        // Predicated region
        $region41: #{transformer_forward.1} parent=35 // pred_check
          %p332 = pneg %p87
        $region42: #{transformer_forward.1} parent=35 // pred_check_branch
          %334 = sbr.rel (%p332) target = $region44
        $region43: #{transformer_forward.1} parent=35 // pred_region
          %p335 = scmp.lt.s32.totalorder %s20, 1
          %s336 = scalar_select %p335, %s20, 1
          %s337 = smul.addr %s336, 32
          %s338 = smul.addr %s337, 4
          %s339 = scalar_lea.vmem %s2, %s338
        $region44: #{transformer_forward.1} parent=35 // pred_fallthru
          _
        // Predicated region
        $region45: #{transformer_forward.1} parent=35 // pred_check
          %p340 = pneg %p113
        $region46: #{transformer_forward.1} parent=35 // pred_check_branch
          %342 = sbr.rel (%p340) target = $region48
        $region47: #{transformer_forward.1} parent=35 // pred_region
          %p343 = scmp.lt.s32.totalorder %s20, 1
          %s344 = scalar_select %p343, %s20, 1
          %s345 = smul.addr %s344, 16
          %s346 = smul.addr %s345, 4
          %s347 = scalar_lea.vmem %s3, %s346
        $region48: #{transformer_forward.1} parent=35 // pred_fallthru
          _
        // Predicated region
        $region49: #{transformer_forward.1} parent=35 // pred_check
          %p348 = pneg %p139
        $region50: #{transformer_forward.1} parent=35 // pred_check_branch
          %350 = sbr.rel (%p348) target = $region52
        $region51: #{transformer_forward.1} parent=35 // pred_region
          %p351 = scmp.lt.s32.totalorder %s20, 1
          %s352 = scalar_select %p351, %s20, 1
          %s353 = smul.addr %s352, 32
          %s354 = smul.addr %s353, 4
          %s355 = scalar_lea.vmem %s4, %s354
        $region52: #{transformer_forward.1} parent=35 // pred_fallthru
          _
        // Predicated region
        $region53: #{transformer_forward.1} parent=35 // pred_check
          %p356 = pneg %p165
        $region54: #{transformer_forward.1} parent=35 // pred_check_branch
          %358 = sbr.rel (%p356) target = $region56
        $region55: #{transformer_forward.1} parent=35 // pred_region
          %p359 = scmp.lt.s32.totalorder %s20, 1
          %s360 = scalar_select %p359, %s20, 1
          %s361 = smul.addr %s360, 2
          %s362 = smul.addr %s361, 8
          %s363 = scalar_lea.vmem %s5, %s362
        $region56: #{transformer_forward.1} parent=35 // pred_fallthru
          _
      $region36: #{transformer_forward.1} parent=5 // pred_fallthru
        _
      %p364 = scmp.le.s32.totalorder 1, %s20
      %p365 = scmp.lt.s32.totalorder %s20, 3
      %p366 = pnand %p364, %p365
      %p367 = pneg %p366
      // Predicated region
      $region57: #{transformer_forward.1} parent=5 // pred_check
        _
      $region58: #{transformer_forward.1} parent=5 // pred_check_branch
        %369 = sbr.rel (%p366) target = $region60
      $region59: #{transformer_forward.1} parent=5 // pred_region
        %s370 = ssub.s32 %s20, 1
        %s371 = sand.u32 %s54, 1
        %s372 = scalar_lea.sflag [#allocation4], %s371
        %s373 = sand.u32 %s54, 1
        %s374 = smul.addr %s373, 192
        %s375 = scalar_lea.vmem [#allocation3], %s374
        // Predicated region
        $region61: #{transformer_forward.1} parent=59 // pred_check
          %p376 = pneg %p67
        $region62: #{transformer_forward.1} parent=59 // pred_check_branch
          %378 = sbr.rel (%p376) target = $region64
        $region63: #{transformer_forward.1} parent=59 // pred_region
          %380 = dma.done %s372, 3072
        $region64: #{transformer_forward.1} parent=59 // pred_fallthru
          _
        %p381 = pneg %p41
        %p382 = pneg %p38
        %s383 = sand.u32 %s54, 1
        %s384 = scalar_lea.sflag [#allocation4], %s383
        %s385 = sand.u32 %s54, 1
        %s386 = smul.addr %s385, 192
        %s387 = scalar_lea.vmem [#allocation3], %s386
        %p388 = pneg %p67
        %p389 = pneg %p64
        %p390 = scmp.lt.s32.totalorder %s25, 1
        %s391 = scalar_select %p390, %s25, 1
        %s392 = smul.addr %s391, 32
        %s393 = smul.addr %s392, 4
        %s394 = scalar_lea.vmem %s2, %s393
        %p395 = pneg %p93
        %p396 = pneg %p90
        %p397 = scmp.lt.s32.totalorder %s25, 1
        %s398 = scalar_select %p397, %s25, 1
        %s399 = smul.addr %s398, 16
        %s400 = smul.addr %s399, 4
        %s401 = scalar_lea.vmem %s3, %s400
        %p402 = pneg %p119
        %p403 = pneg %p116
        %p404 = scmp.lt.s32.totalorder %s25, 1
        %s405 = scalar_select %p404, %s25, 1
        %s406 = smul.addr %s405, 32
        %s407 = smul.addr %s406, 4
        %s408 = scalar_lea.vmem %s4, %s407
        %p409 = pneg %p145
        %p410 = pneg %p142
        %p411 = scmp.lt.s32.totalorder %s25, 1
        %s412 = scalar_select %p411, %s25, 1
        %s413 = smul.addr %s412, 2
        %s414 = smul.addr %s413, 8
        %s415 = scalar_lea.vmem %s5, %s414
        %p416 = pneg %p171
        %p417 = pneg %p168
        %p418 = pneg %p192
        %p419 = pneg %p189
        %p420 = pneg %p213
        %p421 = pneg %p210
        %p422 = pneg %p234
        %p423 = pneg %p231
        %p424 = pneg %p255
        %p425 = pneg %p252
        %p426 = pneg %p276
        %p427 = pneg %p273
        %p428 = scmp.lt.s32.totalorder %s25, 1
        %s429 = scalar_select %p428, %s25, 1
        %s430 = smul.addr %s429, 32
        %s431 = smul.addr %s430, 4
        %s432 = scalar_lea.vmem %s2, %s431
        %p433 = scmp.lt.s32.totalorder %s25, 1
        %s434 = scalar_select %p433, %s25, 1
        %s435 = smul.addr %s434, 16
        %s436 = smul.addr %s435, 4
        %s437 = scalar_lea.vmem %s3, %s436
        %p438 = scmp.lt.s32.totalorder %s25, 1
        %s439 = scalar_select %p438, %s25, 1
        %s440 = smul.addr %s439, 32
        %s441 = smul.addr %s440, 4
        %s442 = scalar_lea.vmem %s4, %s441
        %p443 = scmp.lt.s32.totalorder %s25, 1
        %s444 = scalar_select %p443, %s25, 1
        %s445 = smul.addr %s444, 2
        %s446 = smul.addr %s445, 8
        %s447 = scalar_lea.vmem %s5, %s446
        %p449 = scmp.eq.s32.totalorder %s25, 0
        // Predicated region
        $region65: #{transformer_forward.1} parent=59 // pred_check
          %p450 = pneg %p449
        $region66: #{transformer_forward.1} parent=59 // pred_check_branch
          %452 = sbr.rel (%p450) target = $region68
        $region67: #{transformer_forward.1} parent=59 // pred_region
          %v453 = vld [vmem:[%s0] sm:$0xff]
          %v454 = vld [vmem:[%s0 + $0x8] sm:$0xff]
          %vm455 = vcmask 523264
          %456 = vst.msk [vmem:[#allocation2] sm:$0xff] %vm455, %v453
          %457 = vst.msk [vmem:[#allocation2 + $0x8] sm:$0xff] %vm455, %v454
        $region68: #{transformer_forward.1} parent=59 // pred_fallthru
          _
        %v458 = vld [vmem:[#allocation2] sm:$0xff]
        %v459 = vld [vmem:[#allocation2 + $0x8] sm:$0xff]
        %v460 = vlaneseq
        %v461 = vshrl.u32 %v460, 7
        %v462 = vadd.s32 %v461, 8
        %v463 = vlaneseq
        %v464 = vand.u32 %v463, 127
        %vm465 = vcmp.lt.s32.totalorder %v461, 0
        %v466 = vsub.s32 0, %v461
        %v467 = vsel %vm465, %v466, %v461
        %v468 = vshrl.u32 %v467, 1
        %v469 = vand.u32 %v467, 1
        %v470 = vsub.s32 0, %v469
        %v471 = vsel %vm465, %v470, %v469
        %vm472 = vcmp.lt.s32.totalorder %v462, 0
        %v473 = vsub.s32 0, %v462
        %v474 = vsel %vm472, %v473, %v462
        %v475 = vshrl.u32 %v474, 1
        %v476 = vand.u32 %v474, 1
        %v477 = vsub.s32 0, %v476
        %v478 = vsel %vm472, %v477, %v476
        %vm479 = vcmp.ne.s32.totalorder %v471, 0
        %vm480 = vcmp.ne.s32.totalorder %v478, 0
        %vm481 = vcmp.lt.s32.totalorder %v471, 0
        %vm482 = vcmp.lt.s32.totalorder %v478, 0
        %vm483 = vmand %vm481, %vm479
        %vm484 = vmand %vm482, %vm480
        %v485 = vadd.s32 %v471, 2
        %v486 = vadd.s32 %v478, 2
        %v487 = vsel %vm483, %v485, %v471
        %v488 = vsel %vm484, %v486, %v478
        %vm489 = vcmp.lt.s32.totalorder %v464, 0
        %v490 = vsub.s32 0, %v464
        %v491 = vsel %vm489, %v490, %v464
        %v492 = vshrl.u32 %v491, 1
        %v493 = vand.u32 %v491, 1
        %v494 = vsub.s32 0, %v493
        %v495 = vsel %vm489, %v494, %v493
        %vm496 = vcmp.ne.s32.totalorder %v495, 0
        %vm497 = vcmp.lt.s32.totalorder %v495, 0
        %vm498 = vmand %vm497, %vm496
        %v499 = vadd.s32 %v495, 2
        %v500 = vsel %vm498, %v499, %v495
        %vm501 = vcmp.eq.s32.totalorder %v487, %v500
        %vm502 = vcmp.eq.s32.totalorder %v488, %v500
        %v503 = vsel %vm501, 0.0, -1e+30
        %v504 = vsel %vm502, 0.0, -1e+30
        %v505 = vpack.c.bf16 %v459, %v458
        %v506 = vld [vmem:[%s375] sm:$0xff]
        %v507 = vld [vmem:[%s375 + $0x8] sm:$0xff]
        %v508 = vld [vmem:[%s375 + $0x10] sm:$0xff]
        %v509 = vld [vmem:[%s375 + $0x18] sm:$0xff]
        %v510 = vld [vmem:[%s375 + $0x20] sm:$0xff]
        %v511 = vld [vmem:[%s375 + $0x28] sm:$0xff]
        %v512 = vld [vmem:[%s375 + $0x30] sm:$0xff]
        %v513 = vld [vmem:[%s375 + $0x38] sm:$0xff]
        %v514 = vld [vmem:[%s375 + $0x40] sm:$0xff]
        %v515 = vld [vmem:[%s375 + $0x48] sm:$0xff]
        %v516 = vld [vmem:[%s375 + $0x50] sm:$0xff]
        %v517 = vld [vmem:[%s375 + $0x58] sm:$0xff]
        %v518 = vld [vmem:[%s375 + $0x60] sm:$0xff]
        %v519 = vld [vmem:[%s375 + $0x68] sm:$0xff]
        %v520 = vld [vmem:[%s375 + $0x70] sm:$0xff]
        %v521 = vld [vmem:[%s375 + $0x78] sm:$0xff]
        %v522 = vld [vmem:[%s375 + $0x80] sm:$0xff]
        %v523 = vld [vmem:[%s375 + $0x88] sm:$0xff]
        %v524 = vld [vmem:[%s375 + $0x90] sm:$0xff]
        %v525 = vld [vmem:[%s375 + $0x98] sm:$0xff]
        %v526 = vld [vmem:[%s375 + $0xa0] sm:$0xff]
        %v527 = vld [vmem:[%s375 + $0xa8] sm:$0xff]
        %v528 = vld [vmem:[%s375 + $0xb0] sm:$0xff]
        %v529 = vld [vmem:[%s375 + $0xb8] sm:$0xff]
        %v554 = vunpack.c.l.b16 %v506
        %v555 = vunpack.c.h.b16 %v506
        %v556 = vunpack.c.l.b16 %v507
        %v557 = vunpack.c.h.b16 %v507
        %v558 = vunpack.c.l.b16 %v508
        %v559 = vunpack.c.h.b16 %v508
        %v560 = vunpack.c.l.b16 %v509
        %v561 = vunpack.c.h.b16 %v509
        %v562 = vunpack.c.l.b16 %v510
        %v563 = vunpack.c.h.b16 %v510
        %v564 = vunpack.c.l.b16 %v511
        %v565 = vunpack.c.h.b16 %v511
        %v566 = vunpack.c.l.b16 %v512
        %v567 = vunpack.c.h.b16 %v512
        %v568 = vunpack.c.l.b16 %v513
        %v569 = vunpack.c.h.b16 %v513
        %v570 = vunpack.c.l.b16 %v514
        %v571 = vunpack.c.h.b16 %v514
        %v572 = vunpack.c.l.b16 %v515
        %v573 = vunpack.c.h.b16 %v515
        %v574 = vunpack.c.l.b16 %v516
        %v575 = vunpack.c.h.b16 %v516
        %v576 = vunpack.c.l.b16 %v517
        %v577 = vunpack.c.h.b16 %v517
        %v578 = vunpack.c.l.b16 %v518
        %v579 = vunpack.c.h.b16 %v518
        %v580 = vunpack.c.l.b16 %v519
        %v581 = vunpack.c.h.b16 %v519
        %v582 = vunpack.c.l.b16 %v520
        %v583 = vunpack.c.h.b16 %v520
        %v584 = vunpack.c.l.b16 %v521
        %v585 = vunpack.c.h.b16 %v521
        %v586 = vunpack.c.l.b16 %v522
        %v587 = vunpack.c.h.b16 %v522
        %v588 = vunpack.c.l.b16 %v523
        %v589 = vunpack.c.h.b16 %v523
        %v590 = vunpack.c.l.b16 %v524
        %v591 = vunpack.c.h.b16 %v524
        %v592 = vunpack.c.l.b16 %v525
        %v593 = vunpack.c.h.b16 %v525
        %v594 = vunpack.c.l.b16 %v526
        %v595 = vunpack.c.h.b16 %v526
        %v596 = vunpack.c.l.b16 %v527
        %v597 = vunpack.c.h.b16 %v527
        %v598 = vunpack.c.l.b16 %v528
        %v599 = vunpack.c.h.b16 %v528
        %v600 = vunpack.c.l.b16 %v529
        %v601 = vunpack.c.h.b16 %v529
        %v602 = vpack.c.b16 %v560, %v554
        %v603 = vpack.c.b16 %v561, %v555
        %v604 = vpack.c.b16 %v562, %v556
        %v605 = vpack.c.b16 %v563, %v557
        %v606 = vpack.c.b16 %v564, %v558
        %v607 = vpack.c.b16 %v565, %v559
        %v608 = vpack.c.b16 %v572, %v566
        %v609 = vpack.c.b16 %v573, %v567
        %v610 = vpack.c.b16 %v574, %v568
        %v611 = vpack.c.b16 %v575, %v569
        %v612 = vpack.c.b16 %v576, %v570
        %v613 = vpack.c.b16 %v577, %v571
        %v614 = vpack.c.b16 %v584, %v578
        %v615 = vpack.c.b16 %v585, %v579
        %v616 = vpack.c.b16 %v586, %v580
        %v617 = vpack.c.b16 %v587, %v581
        %v618 = vpack.c.b16 %v588, %v582
        %v619 = vpack.c.b16 %v589, %v583
        %v620 = vpack.c.b16 %v596, %v590
        %v621 = vpack.c.b16 %v597, %v591
        %v622 = vpack.c.b16 %v598, %v592
        %v623 = vpack.c.b16 %v599, %v593
        %v624 = vpack.c.b16 %v600, %v594
        %v625 = vpack.c.b16 %v601, %v595
        %vm650 = vcmask 523264
        %v652 = vsel %vm650, %v505, 0
        %654 = vmatpush.bf16.msra.mxu0 0
        %655 = vmatpush.bf16.msra.mxu0 0
        %656 = vmatpush.bf16.msra.mxu0 0
        %657 = vmatpush.bf16.msra.mxu0 0
        %658 = vmatpush.bf16.msra.mxu0 %v620
        %659 = vmatpush.bf16.msra.mxu0 %v614
        %660 = vmatpush.bf16.msra.mxu0 %v608
        %661 = vmatpush.bf16.msra.mxu0 %v602
        %662 = vmatmul.bf16.gmra.mxu0 %v652
        %v663 = vpop.f32.mrf.mxu0
        %v664 = vadd.f32 0.0, %v663
        %v665 = vpop.f32.mrf.mxu0
        %v666 = vadd.f32 0.0, %v665
        %667 = vdwg.mxu0
        %668 = vmatpush.bf16.msra.mxu0 0
        %669 = vmatpush.bf16.msra.mxu0 0
        %670 = vmatpush.bf16.msra.mxu0 0
        %671 = vmatpush.bf16.msra.mxu0 0
        %672 = vmatpush.bf16.msra.mxu0 %v621
        %673 = vmatpush.bf16.msra.mxu0 %v615
        %674 = vmatpush.bf16.msra.mxu0 %v609
        %675 = vmatpush.bf16.msra.mxu0 %v603
        %676 = vmatmul.bf16.gmra.mxu0 %v652
        %v677 = vpop.f32.mrf.mxu0
        %v678 = vadd.f32 0.0, %v677
        %v679 = vpop.f32.mrf.mxu0
        %v680 = vadd.f32 0.0, %v679
        %681 = vdwg.mxu0
        %682 = vmatpush.bf16.msra.mxu0 0
        %683 = vmatpush.bf16.msra.mxu0 0
        %684 = vmatpush.bf16.msra.mxu0 0
        %685 = vmatpush.bf16.msra.mxu0 0
        %686 = vmatpush.bf16.msra.mxu0 %v622
        %687 = vmatpush.bf16.msra.mxu0 %v616
        %688 = vmatpush.bf16.msra.mxu0 %v610
        %689 = vmatpush.bf16.msra.mxu0 %v604
        %690 = vmatmul.bf16.gmra.mxu0 %v652
        %v691 = vpop.f32.mrf.mxu0
        %v692 = vadd.f32 0.0, %v691
        %v693 = vpop.f32.mrf.mxu0
        %v694 = vadd.f32 0.0, %v693
        %695 = vdwg.mxu0
        %696 = vmatpush.bf16.msra.mxu0 0
        %697 = vmatpush.bf16.msra.mxu0 0
        %698 = vmatpush.bf16.msra.mxu0 0
        %699 = vmatpush.bf16.msra.mxu0 0
        %700 = vmatpush.bf16.msra.mxu0 %v623
        %701 = vmatpush.bf16.msra.mxu0 %v617
        %702 = vmatpush.bf16.msra.mxu0 %v611
        %703 = vmatpush.bf16.msra.mxu0 %v605
        %704 = vmatmul.bf16.gmra.mxu0 %v652
        %v705 = vpop.f32.mrf.mxu0
        %v706 = vadd.f32 0.0, %v705
        %v707 = vpop.f32.mrf.mxu0
        %v708 = vadd.f32 0.0, %v707
        %709 = vdwg.mxu0
        %710 = vmatpush.bf16.msra.mxu0 0
        %711 = vmatpush.bf16.msra.mxu0 0
        %712 = vmatpush.bf16.msra.mxu0 0
        %713 = vmatpush.bf16.msra.mxu0 0
        %714 = vmatpush.bf16.msra.mxu0 %v624
        %715 = vmatpush.bf16.msra.mxu0 %v618
        %716 = vmatpush.bf16.msra.mxu0 %v612
        %717 = vmatpush.bf16.msra.mxu0 %v606
        %718 = vmatmul.bf16.gmra.mxu0 %v652
        %v719 = vpop.f32.mrf.mxu0
        %v720 = vadd.f32 0.0, %v719
        %v721 = vpop.f32.mrf.mxu0
        %v722 = vadd.f32 0.0, %v721
        %723 = vdwg.mxu0
        %724 = vmatpush.bf16.msra.mxu0 0
        %725 = vmatpush.bf16.msra.mxu0 0
        %726 = vmatpush.bf16.msra.mxu0 0
        %727 = vmatpush.bf16.msra.mxu0 0
        %728 = vmatpush.bf16.msra.mxu0 %v625
        %729 = vmatpush.bf16.msra.mxu0 %v619
        %730 = vmatpush.bf16.msra.mxu0 %v613
        %731 = vmatpush.bf16.msra.mxu0 %v607
        %732 = vmatmul.bf16.gmra.mxu0 %v652
        %v733 = vpop.f32.mrf.mxu0
        %v734 = vadd.f32 0.0, %v733
        %v735 = vpop.f32.mrf.mxu0
        %v736 = vadd.f32 0.0, %v735
        %737 = vdwg.mxu0
        %v739 = vsel %vm650, %v664, 0
        %v742 = vsel %vm650, %v666, 0
        %v745 = vsel %vm650, %v692, 0
        %v748 = vsel %vm650, %v694, 0
        %750 = vmatpush.xpose.msra.mxu0 0.0
        %751 = vmatpush.xpose.msra.mxu0 0.0
        %752 = vmatpush.xpose.msra.mxu0 0.0
        %753 = vmatpush.xpose.msra.mxu0 0.0
        %754 = vmatpush.xpose.msra.mxu0 0.0
        %755 = vmatpush.xpose.msra.mxu0 0.0
        %756 = vmatpush.xpose.msra.mxu0 0.0
        %757 = vmatpush.xpose.msra.mxu0 0.0
        %758 = vmatpush.xpose.msra.mxu0 0.0
        %759 = vmatpush.xpose.msra.mxu0 0.0
        %760 = vmatpush.xpose.msra.mxu0 0.0
        %761 = vmatpush.xpose.msra.mxu0 0.0
        %762 = vmatpush.xpose.msra.mxu0 0.0
        %763 = vmatpush.xpose.msra.mxu0 0.0
        %764 = vmatpush.xpose.msra.mxu0 %v748
        %765 = vmatpush.xpose.msra.mxu0 %v745
        %766 = vmatmul.f32.gmra.mxu0 %v739
        %v767 = vpop.f32.mrf.mxu0
        %v768 = vadd.f32 %v503, %v767
        %769 = vmatmul.f32.gmra.mxu0 %v742
        %v770 = vpop.f32.mrf.mxu0
        %v771 = vadd.f32 %v504, %v770
        %772 = vdwg.mxu0
        %vm773 = vcmask 130048
        %v774 = vsel %vm773, %v768, -inf
        %775 = vmax.xlane.f32.xlu0 %v774
        %v776 = vpop.xlane.xlu0 %775
        %v777 = vsel %vm773, %v771, -inf
        %778 = vmax.xlane.f32.xlu0 %v777
        %v779 = vpop.xlane.xlu0 %778
        %v780 = vsub.f32 %v768, %v776
        %v781 = vsub.f32 %v771, %v779
        %v782 = vmul.f32 %v780, 1.442695
        %v783 = vpow.pop %v782
        %v784 = vmul.f32 %v781, 1.442695
        %v785 = vpow.pop %v784
        %v786 = vsel %vm773, %v783, 0.0
        %787 = vadd.xlane.f32.xlu0 %v786
        %v788 = vpop.xlane.xlu0 %787
        %v789 = vsel %vm773, %v785, 0.0
        %790 = vadd.xlane.f32.xlu0 %v789
        %v791 = vpop.xlane.xlu0 %790
        %v792 = vrcp.pop %v788
        %v793 = vrcp.pop %v791
        %v794 = vmul.f32 %v783, %v792
        %v795 = vmul.f32 %v785, %v793
        %v797 = vsel %vm773, %v794, 0
        %v800 = vsel %vm773, %v795, 0
        %802 = vmatpush.msra.mxu0 0.0
        %803 = vmatpush.msra.mxu0 0.0
        %804 = vmatpush.msra.mxu0 0.0
        %805 = vmatpush.msra.mxu0 0.0
        %806 = vmatpush.msra.mxu0 0.0
        %807 = vmatpush.msra.mxu0 0.0
        %808 = vmatpush.msra.mxu0 0.0
        %809 = vmatpush.msra.mxu0 0.0
        %810 = vmatpush.msra.mxu0 0.0
        %811 = vmatpush.msra.mxu0 0.0
        %812 = vmatpush.msra.mxu0 0.0
        %813 = vmatpush.msra.mxu0 0.0
        %814 = vmatpush.msra.mxu0 0.0
        %815 = vmatpush.msra.mxu0 0.0
        %816 = vmatpush.msra.mxu0 %v722
        %817 = vmatpush.msra.mxu0 %v720
        %818 = vmatmul.f32.gmra.mxu0 %v797
        %v819 = vpop.f32.mrf.mxu0
        %v820 = vadd.f32 0.0, %v819
        %821 = vmatmul.f32.gmra.mxu0 %v800
        %v822 = vpop.f32.mrf.mxu0
        %v823 = vadd.f32 0.0, %v822
        %824 = vdwg.mxu0
        %825 = vrot.lane.b32.xlu0 %v664, 64
        %v826 = vpop.permute.xlu0 %825
        %827 = vrot.lane.b32.xlu0 %v666, 64
        %v828 = vpop.permute.xlu0 %827
        %829 = vrot.lane.b32.xlu0 %v692, 64
        %v830 = vpop.permute.xlu0 %829
        %831 = vrot.lane.b32.xlu0 %v694, 64
        %v832 = vpop.permute.xlu0 %831
        %v833 = vsel %vm650, %v826, 0
        %v835 = vsel %vm650, %v828, 0
        %v837 = vsel %vm650, %v830, 0
        %v839 = vsel %vm650, %v832, 0
        %841 = vmatpush.xpose.msra.mxu0 0.0
        %842 = vmatpush.xpose.msra.mxu0 0.0
        %843 = vmatpush.xpose.msra.mxu0 0.0
        %844 = vmatpush.xpose.msra.mxu0 0.0
        %845 = vmatpush.xpose.msra.mxu0 0.0
        %846 = vmatpush.xpose.msra.mxu0 0.0
        %847 = vmatpush.xpose.msra.mxu0 0.0
        %848 = vmatpush.xpose.msra.mxu0 0.0
        %849 = vmatpush.xpose.msra.mxu0 0.0
        %850 = vmatpush.xpose.msra.mxu0 0.0
        %851 = vmatpush.xpose.msra.mxu0 0.0
        %852 = vmatpush.xpose.msra.mxu0 0.0
        %853 = vmatpush.xpose.msra.mxu0 0.0
        %854 = vmatpush.xpose.msra.mxu0 0.0
        %855 = vmatpush.xpose.msra.mxu0 %v839
        %856 = vmatpush.xpose.msra.mxu0 %v837
        %857 = vmatmul.f32.gmra.mxu0 %v833
        %v858 = vpop.f32.mrf.mxu0
        %v859 = vadd.f32 %v503, %v858
        %860 = vmatmul.f32.gmra.mxu0 %v835
        %v861 = vpop.f32.mrf.mxu0
        %v862 = vadd.f32 %v504, %v861
        %863 = vdwg.mxu0
        %v864 = vsel %vm773, %v859, -inf
        %865 = vmax.xlane.f32.xlu0 %v864
        %v866 = vpop.xlane.xlu0 %865
        %v867 = vsel %vm773, %v862, -inf
        %868 = vmax.xlane.f32.xlu0 %v867
        %v869 = vpop.xlane.xlu0 %868
        %v870 = vsub.f32 %v859, %v866
        %v871 = vsub.f32 %v862, %v869
        %v872 = vmul.f32 %v870, 1.442695
        %v873 = vpow.pop %v872
        %v874 = vmul.f32 %v871, 1.442695
        %v875 = vpow.pop %v874
        %v876 = vsel %vm773, %v873, 0.0
        %877 = vadd.xlane.f32.xlu0 %v876
        %v878 = vpop.xlane.xlu0 %877
        %v879 = vsel %vm773, %v875, 0.0
        %880 = vadd.xlane.f32.xlu0 %v879
        %v881 = vpop.xlane.xlu0 %880
        %v882 = vrcp.pop %v878
        %v883 = vrcp.pop %v881
        %v884 = vmul.f32 %v873, %v882
        %v885 = vmul.f32 %v875, %v883
        %888 = vrot.lane.b32.xlu0 %v720, 64
        %v889 = vpop.permute.xlu0 %888
        %890 = vrot.lane.b32.xlu0 %v722, 64
        %v891 = vpop.permute.xlu0 %890
        %v895 = vsel %vm773, %v884, 0
        %v898 = vsel %vm773, %v885, 0
        %900 = vmatpush.msra.mxu0 0.0
        %901 = vmatpush.msra.mxu0 0.0
        %902 = vmatpush.msra.mxu0 0.0
        %903 = vmatpush.msra.mxu0 0.0
        %904 = vmatpush.msra.mxu0 0.0
        %905 = vmatpush.msra.mxu0 0.0
        %906 = vmatpush.msra.mxu0 0.0
        %907 = vmatpush.msra.mxu0 0.0
        %908 = vmatpush.msra.mxu0 0.0
        %909 = vmatpush.msra.mxu0 0.0
        %910 = vmatpush.msra.mxu0 0.0
        %911 = vmatpush.msra.mxu0 0.0
        %912 = vmatpush.msra.mxu0 0.0
        %913 = vmatpush.msra.mxu0 0.0
        %914 = vmatpush.msra.mxu0 %v891
        %915 = vmatpush.msra.mxu0 %v889
        %916 = vmatmul.f32.gmra.mxu0 %v895
        %v917 = vpop.f32.mrf.mxu0
        %v918 = vadd.f32 0.0, %v917
        %919 = vmatmul.f32.gmra.mxu0 %v898
        %v920 = vpop.f32.mrf.mxu0
        %v921 = vadd.f32 0.0, %v920
        %922 = vdwg.mxu0
        %v924 = vsel %vm650, %v678, 0
        %v927 = vsel %vm650, %v680, 0
        %v930 = vsel %vm650, %v706, 0
        %v933 = vsel %vm650, %v708, 0
        %935 = vmatpush.xpose.msra.mxu0 0.0
        %936 = vmatpush.xpose.msra.mxu0 0.0
        %937 = vmatpush.xpose.msra.mxu0 0.0
        %938 = vmatpush.xpose.msra.mxu0 0.0
        %939 = vmatpush.xpose.msra.mxu0 0.0
        %940 = vmatpush.xpose.msra.mxu0 0.0
        %941 = vmatpush.xpose.msra.mxu0 0.0
        %942 = vmatpush.xpose.msra.mxu0 0.0
        %943 = vmatpush.xpose.msra.mxu0 0.0
        %944 = vmatpush.xpose.msra.mxu0 0.0
        %945 = vmatpush.xpose.msra.mxu0 0.0
        %946 = vmatpush.xpose.msra.mxu0 0.0
        %947 = vmatpush.xpose.msra.mxu0 0.0
        %948 = vmatpush.xpose.msra.mxu0 0.0
        %949 = vmatpush.xpose.msra.mxu0 %v933
        %950 = vmatpush.xpose.msra.mxu0 %v930
        %951 = vmatmul.f32.gmra.mxu0 %v924
        %v952 = vpop.f32.mrf.mxu0
        %v953 = vadd.f32 %v503, %v952
        %954 = vmatmul.f32.gmra.mxu0 %v927
        %v955 = vpop.f32.mrf.mxu0
        %v956 = vadd.f32 %v504, %v955
        %957 = vdwg.mxu0
        %v958 = vsel %vm773, %v953, -inf
        %959 = vmax.xlane.f32.xlu0 %v958
        %v960 = vpop.xlane.xlu0 %959
        %v961 = vsel %vm773, %v956, -inf
        %962 = vmax.xlane.f32.xlu0 %v961
        %v963 = vpop.xlane.xlu0 %962
        %v964 = vsub.f32 %v953, %v960
        %v965 = vsub.f32 %v956, %v963
        %v966 = vmul.f32 %v964, 1.442695
        %v967 = vpow.pop %v966
        %v968 = vmul.f32 %v965, 1.442695
        %v969 = vpow.pop %v968
        %v970 = vsel %vm773, %v967, 0.0
        %971 = vadd.xlane.f32.xlu0 %v970
        %v972 = vpop.xlane.xlu0 %971
        %v973 = vsel %vm773, %v969, 0.0
        %974 = vadd.xlane.f32.xlu0 %v973
        %v975 = vpop.xlane.xlu0 %974
        %v976 = vrcp.pop %v972
        %v977 = vrcp.pop %v975
        %v978 = vmul.f32 %v967, %v976
        %v979 = vmul.f32 %v969, %v977
        %v981 = vsel %vm773, %v978, 0
        %v984 = vsel %vm773, %v979, 0
        %986 = vmatpush.msra.mxu0 0.0
        %987 = vmatpush.msra.mxu0 0.0
        %988 = vmatpush.msra.mxu0 0.0
        %989 = vmatpush.msra.mxu0 0.0
        %990 = vmatpush.msra.mxu0 0.0
        %991 = vmatpush.msra.mxu0 0.0
        %992 = vmatpush.msra.mxu0 0.0
        %993 = vmatpush.msra.mxu0 0.0
        %994 = vmatpush.msra.mxu0 0.0
        %995 = vmatpush.msra.mxu0 0.0
        %996 = vmatpush.msra.mxu0 0.0
        %997 = vmatpush.msra.mxu0 0.0
        %998 = vmatpush.msra.mxu0 0.0
        %999 = vmatpush.msra.mxu0 0.0
        %1000 = vmatpush.msra.mxu0 %v736
        %1001 = vmatpush.msra.mxu0 %v734
        %1002 = vmatmul.f32.gmra.mxu0 %v981
        %v1003 = vpop.f32.mrf.mxu0
        %v1004 = vadd.f32 0.0, %v1003
        %1005 = vmatmul.f32.gmra.mxu0 %v984
        %v1006 = vpop.f32.mrf.mxu0
        %v1007 = vadd.f32 0.0, %v1006
        %1008 = vdwg.mxu0
        %1009 = vrot.lane.b32.xlu0 %v678, 64
        %v1010 = vpop.permute.xlu0 %1009
        %1011 = vrot.lane.b32.xlu0 %v680, 64
        %v1012 = vpop.permute.xlu0 %1011
        %1013 = vrot.lane.b32.xlu0 %v706, 64
        %v1014 = vpop.permute.xlu0 %1013
        %1015 = vrot.lane.b32.xlu0 %v708, 64
        %v1016 = vpop.permute.xlu0 %1015
        %v1017 = vsel %vm650, %v1010, 0
        %v1019 = vsel %vm650, %v1012, 0
        %v1021 = vsel %vm650, %v1014, 0
        %v1023 = vsel %vm650, %v1016, 0
        %1025 = vmatpush.xpose.msra.mxu0 0.0
        %1026 = vmatpush.xpose.msra.mxu0 0.0
        %1027 = vmatpush.xpose.msra.mxu0 0.0
        %1028 = vmatpush.xpose.msra.mxu0 0.0
        %1029 = vmatpush.xpose.msra.mxu0 0.0
        %1030 = vmatpush.xpose.msra.mxu0 0.0
        %1031 = vmatpush.xpose.msra.mxu0 0.0
        %1032 = vmatpush.xpose.msra.mxu0 0.0
        %1033 = vmatpush.xpose.msra.mxu0 0.0
        %1034 = vmatpush.xpose.msra.mxu0 0.0
        %1035 = vmatpush.xpose.msra.mxu0 0.0
        %1036 = vmatpush.xpose.msra.mxu0 0.0
        %1037 = vmatpush.xpose.msra.mxu0 0.0
        %1038 = vmatpush.xpose.msra.mxu0 0.0
        %1039 = vmatpush.xpose.msra.mxu0 %v1023
        %1040 = vmatpush.xpose.msra.mxu0 %v1021
        %1041 = vmatmul.f32.gmra.mxu0 %v1017
        %v1042 = vpop.f32.mrf.mxu0
        %v1043 = vadd.f32 %v503, %v1042
        %1044 = vmatmul.f32.gmra.mxu0 %v1019
        %v1045 = vpop.f32.mrf.mxu0
        %v1046 = vadd.f32 %v504, %v1045
        %1047 = vdwg.mxu0
        %v1048 = vsel %vm773, %v1043, -inf
        %1049 = vmax.xlane.f32.xlu0 %v1048
        %v1050 = vpop.xlane.xlu0 %1049
        %v1051 = vsel %vm773, %v1046, -inf
        %1052 = vmax.xlane.f32.xlu0 %v1051
        %v1053 = vpop.xlane.xlu0 %1052
        %v1054 = vsub.f32 %v1043, %v1050
        %v1055 = vsub.f32 %v1046, %v1053
        %v1056 = vmul.f32 %v1054, 1.442695
        %v1057 = vpow.pop %v1056
        %v1058 = vmul.f32 %v1055, 1.442695
        %v1059 = vpow.pop %v1058
        %v1060 = vsel %vm773, %v1057, 0.0
        %1061 = vadd.xlane.f32.xlu0 %v1060
        %v1062 = vpop.xlane.xlu0 %1061
        %v1063 = vsel %vm773, %v1059, 0.0
        %1064 = vadd.xlane.f32.xlu0 %v1063
        %v1065 = vpop.xlane.xlu0 %1064
        %v1066 = vrcp.pop %v1062
        %v1067 = vrcp.pop %v1065
        %v1068 = vmul.f32 %v1057, %v1066
        %v1069 = vmul.f32 %v1059, %v1067
        %1072 = vrot.lane.b32.xlu0 %v734, 64
        %v1073 = vpop.permute.xlu0 %1072
        %1074 = vrot.lane.b32.xlu0 %v736, 64
        %v1075 = vpop.permute.xlu0 %1074
        %v1079 = vsel %vm773, %v1068, 0
        %v1082 = vsel %vm773, %v1069, 0
        %1084 = vmatpush.msra.mxu0 0.0
        %1085 = vmatpush.msra.mxu0 0.0
        %1086 = vmatpush.msra.mxu0 0.0
        %1087 = vmatpush.msra.mxu0 0.0
        %1088 = vmatpush.msra.mxu0 0.0
        %1089 = vmatpush.msra.mxu0 0.0
        %1090 = vmatpush.msra.mxu0 0.0
        %1091 = vmatpush.msra.mxu0 0.0
        %1092 = vmatpush.msra.mxu0 0.0
        %1093 = vmatpush.msra.mxu0 0.0
        %1094 = vmatpush.msra.mxu0 0.0
        %1095 = vmatpush.msra.mxu0 0.0
        %1096 = vmatpush.msra.mxu0 0.0
        %1097 = vmatpush.msra.mxu0 0.0
        %1098 = vmatpush.msra.mxu0 %v1075
        %1099 = vmatpush.msra.mxu0 %v1073
        %1100 = vmatmul.f32.gmra.mxu0 %v1079
        %v1101 = vpop.f32.mrf.mxu0
        %v1102 = vadd.f32 0.0, %v1101
        %1103 = vmatmul.f32.gmra.mxu0 %v1082
        %v1104 = vpop.f32.mrf.mxu0
        %v1105 = vadd.f32 0.0, %v1104
        %1106 = vdwg.mxu0
        %1109 = vrot.lane.b32.xlu0 %v918, 64
        %v1110 = vpop.permute.xlu0 %1109
        %1111 = vrot.lane.b32.xlu0 %v921, 64
        %v1112 = vpop.permute.xlu0 %1111
        %1117 = vrot.lane.b32.xlu0 %v1102, 64
        %v1118 = vpop.permute.xlu0 %1117
        %1119 = vrot.lane.b32.xlu0 %v1105, 64
        %v1120 = vpop.permute.xlu0 %1119
        %v1123 = vsel %vm650, %v820, %v1110
        %v1124 = vsel %vm650, %v823, %v1112
        %v1125 = vsel %vm650, %v1004, %v1118
        %v1126 = vsel %vm650, %v1007, %v1120
        %v1127 = vpack.c.bf16 %v1124, %v1123
        %v1128 = vpack.c.bf16 %v1126, %v1125
        %v1129 = vld [vmem:[%s432] sm:$0xf]
        %v1130 = vld [vmem:[%s432 + $0x4] sm:$0xf]
        %v1131 = vld [vmem:[%s432 + $0x8] sm:$0xf]
        %v1132 = vld [vmem:[%s432 + $0xc] sm:$0xf]
        %v1133 = vld [vmem:[%s432 + $0x10] sm:$0xf]
        %v1134 = vld [vmem:[%s432 + $0x14] sm:$0xf]
        %v1135 = vld [vmem:[%s432 + $0x18] sm:$0xf]
        %v1136 = vld [vmem:[%s432 + $0x1c] sm:$0xf]
        %v1137 = vld [vmem:[%s432 + $0x20] sm:$0xf]
        %v1138 = vld [vmem:[%s432 + $0x24] sm:$0xf]
        %v1139 = vld [vmem:[%s432 + $0x28] sm:$0xf]
        %v1140 = vld [vmem:[%s432 + $0x2c] sm:$0xf]
        %v1141 = vld [vmem:[%s432 + $0x30] sm:$0xf]
        %v1142 = vld [vmem:[%s432 + $0x34] sm:$0xf]
        %v1143 = vld [vmem:[%s432 + $0x38] sm:$0xf]
        %v1144 = vld [vmem:[%s432 + $0x3c] sm:$0xf]
        %v1145 = vld [vmem:[%s432 + $0x40] sm:$0xf]
        %v1146 = vld [vmem:[%s432 + $0x44] sm:$0xf]
        %v1147 = vld [vmem:[%s432 + $0x48] sm:$0xf]
        %v1148 = vld [vmem:[%s432 + $0x4c] sm:$0xf]
        %v1149 = vld [vmem:[%s432 + $0x50] sm:$0xf]
        %v1150 = vld [vmem:[%s432 + $0x54] sm:$0xf]
        %v1151 = vld [vmem:[%s432 + $0x58] sm:$0xf]
        %v1152 = vld [vmem:[%s432 + $0x5c] sm:$0xf]
        %v1153 = vld [vmem:[%s432 + $0x60] sm:$0xf]
        %v1154 = vld [vmem:[%s432 + $0x64] sm:$0xf]
        %v1155 = vld [vmem:[%s432 + $0x68] sm:$0xf]
        %v1156 = vld [vmem:[%s432 + $0x6c] sm:$0xf]
        %v1157 = vld [vmem:[%s432 + $0x70] sm:$0xf]
        %v1158 = vld [vmem:[%s432 + $0x74] sm:$0xf]
        %v1159 = vld [vmem:[%s432 + $0x78] sm:$0xf]
        %v1160 = vld [vmem:[%s432 + $0x7c] sm:$0xf]
        %v1161 = vld [vmem:[%s447] sm:$0xff]
        %v1162 = vld [vmem:[%s447 + $0x8] sm:$0xff]
        %v1163 = vperm.slane %v1161, 0
        %v1196 = vunpack.c.l.b16 %v1129
        %v1197 = vunpack.c.l.b16 %v1130
        %v1198 = vunpack.c.l.b16 %v1131
        %v1199 = vunpack.c.l.b16 %v1132
        %v1200 = vunpack.c.l.b16 %v1133
        %v1201 = vunpack.c.l.b16 %v1134
        %v1202 = vunpack.c.l.b16 %v1135
        %v1203 = vunpack.c.l.b16 %v1136
        %v1204 = vunpack.c.l.b16 %v1137
        %v1205 = vunpack.c.l.b16 %v1138
        %v1206 = vunpack.c.l.b16 %v1139
        %v1207 = vunpack.c.l.b16 %v1140
        %v1208 = vunpack.c.l.b16 %v1141
        %v1209 = vunpack.c.l.b16 %v1142
        %v1210 = vunpack.c.l.b16 %v1143
        %v1211 = vunpack.c.l.b16 %v1144
        %v1212 = vunpack.c.l.b16 %v1145
        %v1213 = vunpack.c.l.b16 %v1146
        %v1214 = vunpack.c.l.b16 %v1147
        %v1215 = vunpack.c.l.b16 %v1148
        %v1216 = vunpack.c.l.b16 %v1149
        %v1217 = vunpack.c.l.b16 %v1150
        %v1218 = vunpack.c.l.b16 %v1151
        %v1219 = vunpack.c.l.b16 %v1152
        %v1220 = vunpack.c.l.b16 %v1153
        %v1221 = vunpack.c.l.b16 %v1154
        %v1222 = vunpack.c.l.b16 %v1155
        %v1223 = vunpack.c.l.b16 %v1156
        %v1224 = vunpack.c.l.b16 %v1157
        %v1225 = vunpack.c.l.b16 %v1158
        %v1226 = vunpack.c.l.b16 %v1159
        %v1227 = vunpack.c.l.b16 %v1160
        %v1228 = vpack.c.b16 %v1197, %v1196
        %v1229 = vpack.c.b16 %v1199, %v1198
        %v1230 = vpack.c.b16 %v1201, %v1200
        %v1231 = vpack.c.b16 %v1203, %v1202
        %v1232 = vpack.c.b16 %v1205, %v1204
        %v1233 = vpack.c.b16 %v1207, %v1206
        %v1234 = vpack.c.b16 %v1209, %v1208
        %v1235 = vpack.c.b16 %v1211, %v1210
        %v1236 = vpack.c.b16 %v1213, %v1212
        %v1237 = vpack.c.b16 %v1215, %v1214
        %v1238 = vpack.c.b16 %v1217, %v1216
        %v1239 = vpack.c.b16 %v1219, %v1218
        %v1240 = vpack.c.b16 %v1221, %v1220
        %v1241 = vpack.c.b16 %v1223, %v1222
        %v1242 = vpack.c.b16 %v1225, %v1224
        %v1243 = vpack.c.b16 %v1227, %v1226
        %1260 = vmatpush.bf16.msra.mxu0 %v1235
        %1261 = vmatpush.bf16.msra.mxu0 %v1234
        %1262 = vmatpush.bf16.msra.mxu0 %v1233
        %1263 = vmatpush.bf16.msra.mxu0 %v1232
        %1264 = vmatpush.bf16.msra.mxu0 %v1231
        %1265 = vmatpush.bf16.msra.mxu0 %v1230
        %1266 = vmatpush.bf16.msra.mxu0 %v1229
        %1267 = vmatpush.bf16.msra.mxu0 %v1228
        %1268 = vmatmul.bf16.gmra.mxu0 %v1127
        %v1269 = vpop.f32.mrf.mxu0
        %v1270 = vadd.f32 %v1163, %v1269
        %v1271 = vpop.f32.mrf.mxu0
        %v1272 = vadd.f32 %v1163, %v1271
        %1273 = vdwg.mxu0
        %1274 = vmatpush.bf16.msra.mxu0 %v1243
        %1275 = vmatpush.bf16.msra.mxu0 %v1242
        %1276 = vmatpush.bf16.msra.mxu0 %v1241
        %1277 = vmatpush.bf16.msra.mxu0 %v1240
        %1278 = vmatpush.bf16.msra.mxu0 %v1239
        %1279 = vmatpush.bf16.msra.mxu0 %v1238
        %1280 = vmatpush.bf16.msra.mxu0 %v1237
        %1281 = vmatpush.bf16.msra.mxu0 %v1236
        %1282 = vmatmul.bf16.gmra.mxu0 %v1128
        %v1283 = vpop.f32.mrf.mxu0
        %v1284 = vadd.f32 %v1270, %v1283
        %v1285 = vpop.f32.mrf.mxu0
        %v1286 = vadd.f32 %v1272, %v1285
        %1287 = vdwg.mxu0
        %v1288 = vadd.f32 %v1284, %v458
        %v1289 = vadd.f32 %v1286, %v459
        %v1290 = vsel %vm650, %v1288, 0.0
        %1291 = vadd.xlane.f32.xlu0 %v1290
        %v1292 = vpop.xlane.xlu0 %1291
        %v1293 = vsel %vm650, %v1289, 0.0
        %1294 = vadd.xlane.f32.xlu0 %v1293
        %v1295 = vpop.xlane.xlu0 %1294
        %v1296 = vrcp.pop 64.0
        %v1297 = vmul.f32 64.0, %v1296
        %v1298 = vsub.f32 1.0, %v1297
        %v1299 = vmul.f32 %v1296, %v1298
        %v1300 = vadd.f32 %v1296, %v1299
        %vm1301 = vweird.f32 %v1296
        %v1302 = vsel %vm1301, %v1296, %v1300
        %v1303 = vmul.f32 %v1292, %v1302
        %v1304 = vmul.f32 %v1295, %v1302
        %v1305 = vsub.f32 %v1288, %v1303
        %v1306 = vsub.f32 %v1289, %v1304
        %v1307 = vmul.f32 %v1305, %v1305
        %v1308 = vmul.f32 %v1306, %v1306
        %v1309 = vsel %vm650, %v1307, 0.0
        %1310 = vadd.xlane.f32.xlu0 %v1309
        %v1311 = vpop.xlane.xlu0 %1310
        %v1312 = vsel %vm650, %v1308, 0.0
        %1313 = vadd.xlane.f32.xlu0 %v1312
        %v1314 = vpop.xlane.xlu0 %1313
        %v1315 = vmul.f32 %v1311, %v1302
        %v1316 = vmul.f32 %v1314, %v1302
        %v1317 = vadd.f32 %v1315, 1e-05
        %v1318 = vadd.f32 %v1316, 1e-05
        %v1319 = vrsqrt.pop %v1317
        %v1320 = vmul.f32 %v1319, %v1317
        %v1321 = vmul.f32 %v1320, %v1319
        %v1322 = vmul.f32 0.5, %v1321
        %v1323 = vsub.f32 1.5, %v1322
        %v1324 = vmul.f32 %v1319, %v1323
        %vm1325 = vweird.f32 %v1317
        %vm1326 = vweird.f32 %v1319
        %vm1327 = vmor %vm1325, %vm1326
        %v1328 = vsel %vm1327, %v1319, %v1324
        %v1329 = vrsqrt.pop %v1318
        %v1330 = vmul.f32 %v1329, %v1318
        %v1331 = vmul.f32 %v1330, %v1329
        %v1332 = vmul.f32 0.5, %v1331
        %v1333 = vsub.f32 1.5, %v1332
        %v1334 = vmul.f32 %v1329, %v1333
        %vm1335 = vweird.f32 %v1318
        %vm1336 = vweird.f32 %v1329
        %vm1337 = vmor %vm1335, %vm1336
        %v1338 = vsel %vm1337, %v1329, %v1334
        %v1339 = vmul.f32 %v1305, %v1328
        %v1340 = vmul.f32 %v1306, %v1338
        %v1341 = vperm.slane %v1161, 1
        %v1342 = vmul.f32 %v1339, %v1341
        %v1343 = vmul.f32 %v1340, %v1341
        %v1344 = vperm.slane %v1161, 2
        %v1345 = vadd.f32 %v1342, %v1344
        %v1346 = vadd.f32 %v1343, %v1344
        %v1347 = vpack.c.bf16 %v1346, %v1345
        %v1348 = vld [vmem:[%s437] sm:$0xff]
        %v1349 = vld [vmem:[%s437 + $0x8] sm:$0xff]
        %v1350 = vld [vmem:[%s437 + $0x10] sm:$0xff]
        %v1351 = vld [vmem:[%s437 + $0x18] sm:$0xff]
        %v1352 = vld [vmem:[%s437 + $0x20] sm:$0xff]
        %v1353 = vld [vmem:[%s437 + $0x28] sm:$0xff]
        %v1354 = vld [vmem:[%s437 + $0x30] sm:$0xff]
        %v1355 = vld [vmem:[%s437 + $0x38] sm:$0xff]
        %v1356 = vperm.slane %v1161, 3
        %v1357 = vperm.slane %v1162, 3
        %v1366 = vunpack.c.l.b16 %v1348
        %v1367 = vunpack.c.h.b16 %v1348
        %v1368 = vunpack.c.l.b16 %v1349
        %v1369 = vunpack.c.h.b16 %v1349
        %v1370 = vunpack.c.l.b16 %v1350
        %v1371 = vunpack.c.h.b16 %v1350
        %v1372 = vunpack.c.l.b16 %v1351
        %v1373 = vunpack.c.h.b16 %v1351
        %v1374 = vunpack.c.l.b16 %v1352
        %v1375 = vunpack.c.h.b16 %v1352
        %v1376 = vunpack.c.l.b16 %v1353
        %v1377 = vunpack.c.h.b16 %v1353
        %v1378 = vunpack.c.l.b16 %v1354
        %v1379 = vunpack.c.h.b16 %v1354
        %v1380 = vunpack.c.l.b16 %v1355
        %v1381 = vunpack.c.h.b16 %v1355
        %v1382 = vpack.c.b16 %v1368, %v1366
        %v1383 = vpack.c.b16 %v1369, %v1367
        %v1384 = vpack.c.b16 %v1372, %v1370
        %v1385 = vpack.c.b16 %v1373, %v1371
        %v1386 = vpack.c.b16 %v1376, %v1374
        %v1387 = vpack.c.b16 %v1377, %v1375
        %v1388 = vpack.c.b16 %v1380, %v1378
        %v1389 = vpack.c.b16 %v1381, %v1379
        %v1399 = vsel %vm650, %v1347, 0
        %1401 = vmatpush.bf16.msra.mxu0 0
        %1402 = vmatpush.bf16.msra.mxu0 0
        %1403 = vmatpush.bf16.msra.mxu0 0
        %1404 = vmatpush.bf16.msra.mxu0 0
        %1405 = vmatpush.bf16.msra.mxu0 %v1388
        %1406 = vmatpush.bf16.msra.mxu0 %v1386
        %1407 = vmatpush.bf16.msra.mxu0 %v1384
        %1408 = vmatpush.bf16.msra.mxu0 %v1382
        %1409 = vmatmul.bf16.gmra.mxu0 %v1399
        %v1410 = vpop.f32.mrf.mxu0
        %v1411 = vadd.f32 %v1356, %v1410
        %v1412 = vpop.f32.mrf.mxu0
        %v1413 = vadd.f32 %v1356, %v1412
        %1414 = vdwg.mxu0
        %1415 = vmatpush.bf16.msra.mxu0 0
        %1416 = vmatpush.bf16.msra.mxu0 0
        %1417 = vmatpush.bf16.msra.mxu0 0
        %1418 = vmatpush.bf16.msra.mxu0 0
        %1419 = vmatpush.bf16.msra.mxu0 %v1389
        %1420 = vmatpush.bf16.msra.mxu0 %v1387
        %1421 = vmatpush.bf16.msra.mxu0 %v1385
        %1422 = vmatpush.bf16.msra.mxu0 %v1383
        %1423 = vmatmul.bf16.gmra.mxu0 %v1399
        %v1424 = vpop.f32.mrf.mxu0
        %v1425 = vadd.f32 %v1357, %v1424
        %v1426 = vpop.f32.mrf.mxu0
        %v1427 = vadd.f32 %v1357, %v1426
        %1428 = vdwg.mxu0
        %v1429 = vmax.f32 %v1411, 0.0
        %v1430 = vmax.f32 %v1425, 0.0
        %v1431 = vmax.f32 %v1413, 0.0
        %v1432 = vmax.f32 %v1427, 0.0
        %v1433 = vpack.c.bf16 %v1431, %v1429
        %v1434 = vpack.c.bf16 %v1432, %v1430
        %v1435 = vld [vmem:[%s442] sm:$0xf]
        %v1436 = vld [vmem:[%s442 + $0x4] sm:$0xf]
        %v1437 = vld [vmem:[%s442 + $0x8] sm:$0xf]
        %v1438 = vld [vmem:[%s442 + $0xc] sm:$0xf]
        %v1439 = vld [vmem:[%s442 + $0x10] sm:$0xf]
        %v1440 = vld [vmem:[%s442 + $0x14] sm:$0xf]
        %v1441 = vld [vmem:[%s442 + $0x18] sm:$0xf]
        %v1442 = vld [vmem:[%s442 + $0x1c] sm:$0xf]
        %v1443 = vld [vmem:[%s442 + $0x20] sm:$0xf]
        %v1444 = vld [vmem:[%s442 + $0x24] sm:$0xf]
        %v1445 = vld [vmem:[%s442 + $0x28] sm:$0xf]
        %v1446 = vld [vmem:[%s442 + $0x2c] sm:$0xf]
        %v1447 = vld [vmem:[%s442 + $0x30] sm:$0xf]
        %v1448 = vld [vmem:[%s442 + $0x34] sm:$0xf]
        %v1449 = vld [vmem:[%s442 + $0x38] sm:$0xf]
        %v1450 = vld [vmem:[%s442 + $0x3c] sm:$0xf]
        %v1451 = vld [vmem:[%s442 + $0x40] sm:$0xf]
        %v1452 = vld [vmem:[%s442 + $0x44] sm:$0xf]
        %v1453 = vld [vmem:[%s442 + $0x48] sm:$0xf]
        %v1454 = vld [vmem:[%s442 + $0x4c] sm:$0xf]
        %v1455 = vld [vmem:[%s442 + $0x50] sm:$0xf]
        %v1456 = vld [vmem:[%s442 + $0x54] sm:$0xf]
        %v1457 = vld [vmem:[%s442 + $0x58] sm:$0xf]
        %v1458 = vld [vmem:[%s442 + $0x5c] sm:$0xf]
        %v1459 = vld [vmem:[%s442 + $0x60] sm:$0xf]
        %v1460 = vld [vmem:[%s442 + $0x64] sm:$0xf]
        %v1461 = vld [vmem:[%s442 + $0x68] sm:$0xf]
        %v1462 = vld [vmem:[%s442 + $0x6c] sm:$0xf]
        %v1463 = vld [vmem:[%s442 + $0x70] sm:$0xf]
        %v1464 = vld [vmem:[%s442 + $0x74] sm:$0xf]
        %v1465 = vld [vmem:[%s442 + $0x78] sm:$0xf]
        %v1466 = vld [vmem:[%s442 + $0x7c] sm:$0xf]
        %v1467 = vperm.slane %v1161, 4
        %v1500 = vunpack.c.l.b16 %v1435
        %v1501 = vunpack.c.l.b16 %v1436
        %v1502 = vunpack.c.l.b16 %v1437
        %v1503 = vunpack.c.l.b16 %v1438
        %v1504 = vunpack.c.l.b16 %v1439
        %v1505 = vunpack.c.l.b16 %v1440
        %v1506 = vunpack.c.l.b16 %v1441
        %v1507 = vunpack.c.l.b16 %v1442
        %v1508 = vunpack.c.l.b16 %v1443
        %v1509 = vunpack.c.l.b16 %v1444
        %v1510 = vunpack.c.l.b16 %v1445
        %v1511 = vunpack.c.l.b16 %v1446
        %v1512 = vunpack.c.l.b16 %v1447
        %v1513 = vunpack.c.l.b16 %v1448
        %v1514 = vunpack.c.l.b16 %v1449
        %v1515 = vunpack.c.l.b16 %v1450
        %v1516 = vunpack.c.l.b16 %v1451
        %v1517 = vunpack.c.l.b16 %v1452
        %v1518 = vunpack.c.l.b16 %v1453
        %v1519 = vunpack.c.l.b16 %v1454
        %v1520 = vunpack.c.l.b16 %v1455
        %v1521 = vunpack.c.l.b16 %v1456
        %v1522 = vunpack.c.l.b16 %v1457
        %v1523 = vunpack.c.l.b16 %v1458
        %v1524 = vunpack.c.l.b16 %v1459
        %v1525 = vunpack.c.l.b16 %v1460
        %v1526 = vunpack.c.l.b16 %v1461
        %v1527 = vunpack.c.l.b16 %v1462
        %v1528 = vunpack.c.l.b16 %v1463
        %v1529 = vunpack.c.l.b16 %v1464
        %v1530 = vunpack.c.l.b16 %v1465
        %v1531 = vunpack.c.l.b16 %v1466
        %v1532 = vpack.c.b16 %v1501, %v1500
        %v1533 = vpack.c.b16 %v1503, %v1502
        %v1534 = vpack.c.b16 %v1505, %v1504
        %v1535 = vpack.c.b16 %v1507, %v1506
        %v1536 = vpack.c.b16 %v1509, %v1508
        %v1537 = vpack.c.b16 %v1511, %v1510
        %v1538 = vpack.c.b16 %v1513, %v1512
        %v1539 = vpack.c.b16 %v1515, %v1514
        %v1540 = vpack.c.b16 %v1517, %v1516
        %v1541 = vpack.c.b16 %v1519, %v1518
        %v1542 = vpack.c.b16 %v1521, %v1520
        %v1543 = vpack.c.b16 %v1523, %v1522
        %v1544 = vpack.c.b16 %v1525, %v1524
        %v1545 = vpack.c.b16 %v1527, %v1526
        %v1546 = vpack.c.b16 %v1529, %v1528
        %v1547 = vpack.c.b16 %v1531, %v1530
        %1564 = vmatpush.bf16.msra.mxu0 %v1539
        %1565 = vmatpush.bf16.msra.mxu0 %v1538
        %1566 = vmatpush.bf16.msra.mxu0 %v1537
        %1567 = vmatpush.bf16.msra.mxu0 %v1536
        %1568 = vmatpush.bf16.msra.mxu0 %v1535
        %1569 = vmatpush.bf16.msra.mxu0 %v1534
        %1570 = vmatpush.bf16.msra.mxu0 %v1533
        %1571 = vmatpush.bf16.msra.mxu0 %v1532
        %1572 = vmatmul.bf16.gmra.mxu0 %v1433
        %v1573 = vpop.f32.mrf.mxu0
        %v1574 = vadd.f32 %v1467, %v1573
        %v1575 = vpop.f32.mrf.mxu0
        %v1576 = vadd.f32 %v1467, %v1575
        %1577 = vdwg.mxu0
        %1578 = vmatpush.bf16.msra.mxu0 %v1547
        %1579 = vmatpush.bf16.msra.mxu0 %v1546
        %1580 = vmatpush.bf16.msra.mxu0 %v1545
        %1581 = vmatpush.bf16.msra.mxu0 %v1544
        %1582 = vmatpush.bf16.msra.mxu0 %v1543
        %1583 = vmatpush.bf16.msra.mxu0 %v1542
        %1584 = vmatpush.bf16.msra.mxu0 %v1541
        %1585 = vmatpush.bf16.msra.mxu0 %v1540
        %1586 = vmatmul.bf16.gmra.mxu0 %v1434
        %v1587 = vpop.f32.mrf.mxu0
        %v1588 = vadd.f32 %v1574, %v1587
        %v1589 = vpop.f32.mrf.mxu0
        %v1590 = vadd.f32 %v1576, %v1589
        %1591 = vdwg.mxu0
        %v1592 = vadd.f32 %v1588, %v1345
        %v1593 = vadd.f32 %v1590, %v1346
        %v1594 = vsel %vm650, %v1592, 0.0
        %1595 = vadd.xlane.f32.xlu0 %v1594
        %v1596 = vpop.xlane.xlu0 %1595
        %v1597 = vsel %vm650, %v1593, 0.0
        %1598 = vadd.xlane.f32.xlu0 %v1597
        %v1599 = vpop.xlane.xlu0 %1598
        %v1600 = vmul.f32 %v1596, %v1302
        %v1601 = vmul.f32 %v1599, %v1302
        %v1602 = vsub.f32 %v1592, %v1600
        %v1603 = vsub.f32 %v1593, %v1601
        %v1604 = vmul.f32 %v1602, %v1602
        %v1605 = vmul.f32 %v1603, %v1603
        %v1606 = vsel %vm650, %v1604, 0.0
        %1607 = vadd.xlane.f32.xlu0 %v1606
        %v1608 = vpop.xlane.xlu0 %1607
        %v1609 = vsel %vm650, %v1605, 0.0
        %1610 = vadd.xlane.f32.xlu0 %v1609
        %v1611 = vpop.xlane.xlu0 %1610
        %v1612 = vmul.f32 %v1608, %v1302
        %v1613 = vmul.f32 %v1611, %v1302
        %v1614 = vadd.f32 %v1612, 1e-05
        %v1615 = vadd.f32 %v1613, 1e-05
        %v1616 = vrsqrt.pop %v1614
        %v1617 = vmul.f32 %v1616, %v1614
        %v1618 = vmul.f32 %v1617, %v1616
        %v1619 = vmul.f32 0.5, %v1618
        %v1620 = vsub.f32 1.5, %v1619
        %v1621 = vmul.f32 %v1616, %v1620
        %vm1622 = vweird.f32 %v1614
        %vm1623 = vweird.f32 %v1616
        %vm1624 = vmor %vm1622, %vm1623
        %v1625 = vsel %vm1624, %v1616, %v1621
        %v1626 = vrsqrt.pop %v1615
        %v1627 = vmul.f32 %v1626, %v1615
        %v1628 = vmul.f32 %v1627, %v1626
        %v1629 = vmul.f32 0.5, %v1628
        %v1630 = vsub.f32 1.5, %v1629
        %v1631 = vmul.f32 %v1626, %v1630
        %vm1632 = vweird.f32 %v1615
        %vm1633 = vweird.f32 %v1626
        %vm1634 = vmor %vm1632, %vm1633
        %v1635 = vsel %vm1634, %v1626, %v1631
        %v1636 = vmul.f32 %v1602, %v1625
        %v1637 = vmul.f32 %v1603, %v1635
        %v1638 = vperm.slane %v1161, 5
        %v1639 = vmul.f32 %v1636, %v1638
        %v1640 = vmul.f32 %v1637, %v1638
        %v1641 = vperm.slane %v1161, 6
        %v1642 = vadd.f32 %v1639, %v1641
        %v1643 = vadd.f32 %v1640, %v1641
        %1644 = vst.msk [vmem:[#allocation2] sm:$0xff] %vm650, %v1642
        %1645 = vst.msk [vmem:[#allocation2 + $0x8] sm:$0xff] %vm650, %v1643
        %p1646 = scmp.eq.s32.totalorder %s25, 1
        // Predicated region
        $region69: #{transformer_forward.1} parent=59 // pred_check
          %p1647 = pneg %p1646
        $region70: #{transformer_forward.1} parent=59 // pred_check_branch
          %1649 = sbr.rel (%p1647) target = $region72
        $region71: #{transformer_forward.1} parent=59 // pred_region
          %v1651 = vrot.slane %v1642, 2
          %1652 = vrot.lane.b32.xlu0 %v1651, 64
          %v1653 = vpop.permute.xlu0 %1652
          %v1655 = vrot.slane %v1642, 4
          %v1657 = vrot.slane %v1642, 6
          %1658 = vrot.lane.b32.xlu0 %v1657, 64
          %v1659 = vpop.permute.xlu0 %1658
          %v1662 = vrot.slane %v1643, 2
          %1663 = vrot.lane.b32.xlu0 %v1662, 64
          %v1664 = vpop.permute.xlu0 %1663
          %v1666 = vrot.slane %v1643, 4
          %v1668 = vrot.slane %v1643, 6
          %1669 = vrot.lane.b32.xlu0 %v1668, 64
          %v1670 = vpop.permute.xlu0 %1669
          %v1672 = vsel %vm650, %v1642, %v1653
          %v1673 = vsel %vm650, %v1655, %v1659
          %v1674 = vsel %vm650, %v1643, %v1664
          %v1675 = vsel %vm650, %v1666, %v1670
          %v1676 = vpack.c.bf16 %v1672, %v1672
          %v1677 = vpack.c.bf16 %v1673, %v1673
          %v1678 = vpack.c.bf16 %v1674, %v1674
          %v1679 = vpack.c.bf16 %v1675, %v1675
          %v1680 = vld [vmem:[%s6] sm:$0xff]
          %v1681 = vld [vmem:[%s6 + $0x8] sm:$0xff]
          %v1682 = vld [vmem:[%s6 + $0x10] sm:$0xff]
          %v1683 = vld [vmem:[%s6 + $0x18] sm:$0xff]
          %v1684 = vld [vmem:[%s6 + $0x20] sm:$0xff]
          %v1685 = vld [vmem:[%s6 + $0x28] sm:$0xff]
          %v1686 = vld [vmem:[%s6 + $0x30] sm:$0xff]
          %v1687 = vld [vmem:[%s6 + $0x38] sm:$0xff]
          %v1688 = vld [vmem:[%s6 + $0x40] sm:$0xff]
          %v1689 = vld [vmem:[%s6 + $0x48] sm:$0xff]
          %v1690 = vld [vmem:[%s6 + $0x50] sm:$0xff]
          %v1691 = vld [vmem:[%s6 + $0x58] sm:$0xff]
          %v1692 = vld [vmem:[%s6 + $0x60] sm:$0xff]
          %v1693 = vld [vmem:[%s6 + $0x68] sm:$0xff]
          %v1694 = vld [vmem:[%s6 + $0x70] sm:$0xff]
          %v1695 = vld [vmem:[%s6 + $0x78] sm:$0xff]
          %v1696 = vld [vmem:[%s6 + $0x80] sm:$0xff]
          %v1697 = vld [vmem:[%s6 + $0x88] sm:$0xff]
          %v1698 = vld [vmem:[%s6 + $0x90] sm:$0xff]
          %v1699 = vld [vmem:[%s6 + $0x98] sm:$0xff]
          %v1700 = vld [vmem:[%s6 + $0xa0] sm:$0xff]
          %v1701 = vld [vmem:[%s6 + $0xa8] sm:$0xff]
          %v1702 = vld [vmem:[%s6 + $0xb0] sm:$0xff]
          %v1703 = vld [vmem:[%s6 + $0xb8] sm:$0xff]
          %v1704 = vld [vmem:[%s6 + $0xc0] sm:$0xff]
          %v1705 = vld [vmem:[%s6 + $0xc8] sm:$0xff]
          %v1706 = vld [vmem:[%s6 + $0xd0] sm:$0xff]
          %v1707 = vld [vmem:[%s6 + $0xd8] sm:$0xff]
          %v1708 = vld [vmem:[%s6 + $0xe0] sm:$0xff]
          %v1709 = vld [vmem:[%s6 + $0xe8] sm:$0xff]
          %v1710 = vld [vmem:[%s6 + $0xf0] sm:$0xff]
          %v1711 = vld [vmem:[%s6 + $0xf8] sm:$0xff]
          %v1712 = vld [vmem:[%s6 + $0x100] sm:$0xff]
          %v1713 = vld [vmem:[%s6 + $0x108] sm:$0xff]
          %v1714 = vld [vmem:[%s6 + $0x110] sm:$0xff]
          %v1715 = vld [vmem:[%s6 + $0x118] sm:$0xff]
          %v1716 = vld [vmem:[%s6 + $0x120] sm:$0xff]
          %v1717 = vld [vmem:[%s6 + $0x128] sm:$0xff]
          %v1718 = vld [vmem:[%s6 + $0x130] sm:$0xff]
          %v1719 = vld [vmem:[%s6 + $0x138] sm:$0xff]
          %v1720 = vld [vmem:[%s6 + $0x140] sm:$0xff]
          %v1721 = vld [vmem:[%s6 + $0x148] sm:$0xff]
          %v1722 = vld [vmem:[%s6 + $0x150] sm:$0xff]
          %v1723 = vld [vmem:[%s6 + $0x158] sm:$0xff]
          %v1724 = vld [vmem:[%s6 + $0x160] sm:$0xff]
          %v1725 = vld [vmem:[%s6 + $0x168] sm:$0xff]
          %v1726 = vld [vmem:[%s6 + $0x170] sm:$0xff]
          %v1727 = vld [vmem:[%s6 + $0x178] sm:$0xff]
          %v1728 = vld [vmem:[%s6 + $0x180] sm:$0xff]
          %v1729 = vld [vmem:[%s6 + $0x188] sm:$0xff]
          %v1730 = vld [vmem:[%s6 + $0x190] sm:$0xff]
          %v1731 = vld [vmem:[%s6 + $0x198] sm:$0xff]
          %v1732 = vld [vmem:[%s6 + $0x1a0] sm:$0xff]
          %v1733 = vld [vmem:[%s6 + $0x1a8] sm:$0xff]
          %v1734 = vld [vmem:[%s6 + $0x1b0] sm:$0xff]
          %v1735 = vld [vmem:[%s6 + $0x1b8] sm:$0xff]
          %v1736 = vld [vmem:[%s6 + $0x1c0] sm:$0xff]
          %v1737 = vld [vmem:[%s6 + $0x1c8] sm:$0xff]
          %v1738 = vld [vmem:[%s6 + $0x1d0] sm:$0xff]
          %v1739 = vld [vmem:[%s6 + $0x1d8] sm:$0xff]
          %v1740 = vld [vmem:[%s6 + $0x1e0] sm:$0xff]
          %v1741 = vld [vmem:[%s6 + $0x1e8] sm:$0xff]
          %v1742 = vld [vmem:[%s6 + $0x1f0] sm:$0xff]
          %v1743 = vld [vmem:[%s6 + $0x1f8] sm:$0xff]
          %v1744 = vld [vmem:[%s7] sm:$0x3]
          %v1746 = vperm.slane %v1744, 0
          %v1747 = vperm.slane %v1744, 1
          %v1814 = vunpack.c.l.b16 %v1680
          %v1815 = vunpack.c.h.b16 %v1680
          %v1816 = vunpack.c.l.b16 %v1681
          %v1817 = vunpack.c.h.b16 %v1681
          %v1818 = vunpack.c.l.b16 %v1682
          %v1819 = vunpack.c.h.b16 %v1682
          %v1820 = vunpack.c.l.b16 %v1683
          %v1821 = vunpack.c.h.b16 %v1683
          %v1822 = vunpack.c.l.b16 %v1684
          %v1823 = vunpack.c.h.b16 %v1684
          %v1824 = vunpack.c.l.b16 %v1685
          %v1825 = vunpack.c.h.b16 %v1685
          %v1826 = vunpack.c.l.b16 %v1686
          %v1827 = vunpack.c.h.b16 %v1686
          %v1828 = vunpack.c.l.b16 %v1687
          %v1829 = vunpack.c.h.b16 %v1687
          %v1830 = vunpack.c.l.b16 %v1688
          %v1831 = vunpack.c.h.b16 %v1688
          %v1832 = vunpack.c.l.b16 %v1689
          %v1833 = vunpack.c.h.b16 %v1689
          %v1834 = vunpack.c.l.b16 %v1690
          %v1835 = vunpack.c.h.b16 %v1690
          %v1836 = vunpack.c.l.b16 %v1691
          %v1837 = vunpack.c.h.b16 %v1691
          %v1838 = vunpack.c.l.b16 %v1692
          %v1839 = vunpack.c.h.b16 %v1692
          %v1840 = vunpack.c.l.b16 %v1693
          %v1841 = vunpack.c.h.b16 %v1693
          %v1842 = vunpack.c.l.b16 %v1694
          %v1843 = vunpack.c.h.b16 %v1694
          %v1844 = vunpack.c.l.b16 %v1695
          %v1845 = vunpack.c.h.b16 %v1695
          %v1846 = vunpack.c.l.b16 %v1696
          %v1847 = vunpack.c.h.b16 %v1696
          %v1848 = vunpack.c.l.b16 %v1697
          %v1849 = vunpack.c.h.b16 %v1697
          %v1850 = vunpack.c.l.b16 %v1698
          %v1851 = vunpack.c.h.b16 %v1698
          %v1852 = vunpack.c.l.b16 %v1699
          %v1853 = vunpack.c.h.b16 %v1699
          %v1854 = vunpack.c.l.b16 %v1700
          %v1855 = vunpack.c.h.b16 %v1700
          %v1856 = vunpack.c.l.b16 %v1701
          %v1857 = vunpack.c.h.b16 %v1701
          %v1858 = vunpack.c.l.b16 %v1702
          %v1859 = vunpack.c.h.b16 %v1702
          %v1860 = vunpack.c.l.b16 %v1703
          %v1861 = vunpack.c.h.b16 %v1703
          %v1862 = vunpack.c.l.b16 %v1704
          %v1863 = vunpack.c.h.b16 %v1704
          %v1864 = vunpack.c.l.b16 %v1705
          %v1865 = vunpack.c.h.b16 %v1705
          %v1866 = vunpack.c.l.b16 %v1706
          %v1867 = vunpack.c.h.b16 %v1706
          %v1868 = vunpack.c.l.b16 %v1707
          %v1869 = vunpack.c.h.b16 %v1707
          %v1870 = vunpack.c.l.b16 %v1708
          %v1871 = vunpack.c.h.b16 %v1708
          %v1872 = vunpack.c.l.b16 %v1709
          %v1873 = vunpack.c.h.b16 %v1709
          %v1874 = vunpack.c.l.b16 %v1710
          %v1875 = vunpack.c.h.b16 %v1710
          %v1876 = vunpack.c.l.b16 %v1711
          %v1877 = vunpack.c.h.b16 %v1711
          %v1878 = vunpack.c.l.b16 %v1712
          %v1879 = vunpack.c.h.b16 %v1712
          %v1880 = vunpack.c.l.b16 %v1713
          %v1881 = vunpack.c.h.b16 %v1713
          %v1882 = vunpack.c.l.b16 %v1714
          %v1883 = vunpack.c.h.b16 %v1714
          %v1884 = vunpack.c.l.b16 %v1715
          %v1885 = vunpack.c.h.b16 %v1715
          %v1886 = vunpack.c.l.b16 %v1716
          %v1887 = vunpack.c.h.b16 %v1716
          %v1888 = vunpack.c.l.b16 %v1717
          %v1889 = vunpack.c.h.b16 %v1717
          %v1890 = vunpack.c.l.b16 %v1718
          %v1891 = vunpack.c.h.b16 %v1718
          %v1892 = vunpack.c.l.b16 %v1719
          %v1893 = vunpack.c.h.b16 %v1719
          %v1894 = vunpack.c.l.b16 %v1720
          %v1895 = vunpack.c.h.b16 %v1720
          %v1896 = vunpack.c.l.b16 %v1721
          %v1897 = vunpack.c.h.b16 %v1721
          %v1898 = vunpack.c.l.b16 %v1722
          %v1899 = vunpack.c.h.b16 %v1722
          %v1900 = vunpack.c.l.b16 %v1723
          %v1901 = vunpack.c.h.b16 %v1723
          %v1902 = vunpack.c.l.b16 %v1724
          %v1903 = vunpack.c.h.b16 %v1724
          %v1904 = vunpack.c.l.b16 %v1725
          %v1905 = vunpack.c.h.b16 %v1725
          %v1906 = vunpack.c.l.b16 %v1726
          %v1907 = vunpack.c.h.b16 %v1726
          %v1908 = vunpack.c.l.b16 %v1727
          %v1909 = vunpack.c.h.b16 %v1727
          %v1910 = vunpack.c.l.b16 %v1728
          %v1911 = vunpack.c.h.b16 %v1728
          %v1912 = vunpack.c.l.b16 %v1729
          %v1913 = vunpack.c.h.b16 %v1729
          %v1914 = vunpack.c.l.b16 %v1730
          %v1915 = vunpack.c.h.b16 %v1730
          %v1916 = vunpack.c.l.b16 %v1731
          %v1917 = vunpack.c.h.b16 %v1731
          %v1918 = vunpack.c.l.b16 %v1732
          %v1919 = vunpack.c.h.b16 %v1732
          %v1920 = vunpack.c.l.b16 %v1733
          %v1921 = vunpack.c.h.b16 %v1733
          %v1922 = vunpack.c.l.b16 %v1734
          %v1923 = vunpack.c.h.b16 %v1734
          %v1924 = vunpack.c.l.b16 %v1735
          %v1925 = vunpack.c.h.b16 %v1735
          %v1926 = vunpack.c.l.b16 %v1736
          %v1927 = vunpack.c.h.b16 %v1736
          %v1928 = vunpack.c.l.b16 %v1737
          %v1929 = vunpack.c.h.b16 %v1737
          %v1930 = vunpack.c.l.b16 %v1738
          %v1931 = vunpack.c.h.b16 %v1738
          %v1932 = vunpack.c.l.b16 %v1739
          %v1933 = vunpack.c.h.b16 %v1739
          %v1934 = vunpack.c.l.b16 %v1740
          %v1935 = vunpack.c.h.b16 %v1740
          %v1936 = vunpack.c.l.b16 %v1741
          %v1937 = vunpack.c.h.b16 %v1741
          %v1938 = vunpack.c.l.b16 %v1742
          %v1939 = vunpack.c.h.b16 %v1742
          %v1940 = vunpack.c.l.b16 %v1743
          %v1941 = vunpack.c.h.b16 %v1743
          %v1942 = vpack.c.b16 %v1816, %v1814
          %v1943 = vpack.c.b16 %v1817, %v1815
          %v1944 = vpack.c.b16 %v1820, %v1818
          %v1945 = vpack.c.b16 %v1821, %v1819
          %v1946 = vpack.c.b16 %v1824, %v1822
          %v1947 = vpack.c.b16 %v1825, %v1823
          %v1948 = vpack.c.b16 %v1828, %v1826
          %v1949 = vpack.c.b16 %v1829, %v1827
          %v1950 = vpack.c.b16 %v1832, %v1830
          %v1951 = vpack.c.b16 %v1833, %v1831
          %v1952 = vpack.c.b16 %v1836, %v1834
          %v1953 = vpack.c.b16 %v1837, %v1835
          %v1954 = vpack.c.b16 %v1840, %v1838
          %v1955 = vpack.c.b16 %v1841, %v1839
          %v1956 = vpack.c.b16 %v1844, %v1842
          %v1957 = vpack.c.b16 %v1845, %v1843
          %v1958 = vpack.c.b16 %v1848, %v1846
          %v1959 = vpack.c.b16 %v1849, %v1847
          %v1960 = vpack.c.b16 %v1852, %v1850
          %v1961 = vpack.c.b16 %v1853, %v1851
          %v1962 = vpack.c.b16 %v1856, %v1854
          %v1963 = vpack.c.b16 %v1857, %v1855
          %v1964 = vpack.c.b16 %v1860, %v1858
          %v1965 = vpack.c.b16 %v1861, %v1859
          %v1966 = vpack.c.b16 %v1864, %v1862
          %v1967 = vpack.c.b16 %v1865, %v1863
          %v1968 = vpack.c.b16 %v1868, %v1866
          %v1969 = vpack.c.b16 %v1869, %v1867
          %v1970 = vpack.c.b16 %v1872, %v1870
          %v1971 = vpack.c.b16 %v1873, %v1871
          %v1972 = vpack.c.b16 %v1876, %v1874
          %v1973 = vpack.c.b16 %v1877, %v1875
          %v1974 = vpack.c.b16 %v1880, %v1878
          %v1975 = vpack.c.b16 %v1881, %v1879
          %v1976 = vpack.c.b16 %v1884, %v1882
          %v1977 = vpack.c.b16 %v1885, %v1883
          %v1978 = vpack.c.b16 %v1888, %v1886
          %v1979 = vpack.c.b16 %v1889, %v1887
          %v1980 = vpack.c.b16 %v1892, %v1890
          %v1981 = vpack.c.b16 %v1893, %v1891
          %v1982 = vpack.c.b16 %v1896, %v1894
          %v1983 = vpack.c.b16 %v1897, %v1895
          %v1984 = vpack.c.b16 %v1900, %v1898
          %v1985 = vpack.c.b16 %v1901, %v1899
          %v1986 = vpack.c.b16 %v1904, %v1902
          %v1987 = vpack.c.b16 %v1905, %v1903
          %v1988 = vpack.c.b16 %v1908, %v1906
          %v1989 = vpack.c.b16 %v1909, %v1907
          %v1990 = vpack.c.b16 %v1912, %v1910
          %v1991 = vpack.c.b16 %v1913, %v1911
          %v1992 = vpack.c.b16 %v1916, %v1914
          %v1993 = vpack.c.b16 %v1917, %v1915
          %v1994 = vpack.c.b16 %v1920, %v1918
          %v1995 = vpack.c.b16 %v1921, %v1919
          %v1996 = vpack.c.b16 %v1924, %v1922
          %v1997 = vpack.c.b16 %v1925, %v1923
          %v1998 = vpack.c.b16 %v1928, %v1926
          %v1999 = vpack.c.b16 %v1929, %v1927
          %v2000 = vpack.c.b16 %v1932, %v1930
          %v2001 = vpack.c.b16 %v1933, %v1931
          %v2002 = vpack.c.b16 %v1936, %v1934
          %v2003 = vpack.c.b16 %v1937, %v1935
          %v2004 = vpack.c.b16 %v1940, %v1938
          %v2005 = vpack.c.b16 %v1941, %v1939
          %2070 = vmatpush.bf16.msra.mxu0 %v1956
          %2071 = vmatpush.bf16.msra.mxu0 %v1954
          %2072 = vmatpush.bf16.msra.mxu0 %v1952
          %2073 = vmatpush.bf16.msra.mxu0 %v1950
          %2074 = vmatpush.bf16.msra.mxu0 %v1948
          %2075 = vmatpush.bf16.msra.mxu0 %v1946
          %2076 = vmatpush.bf16.msra.mxu0 %v1944
          %2077 = vmatpush.bf16.msra.mxu0 %v1942
          %2078 = vmatmul.bf16.gmra.mxu0 %v1676
          %v2079 = vpop.f32.mrf.mxu0
          %v2080 = vadd.f32 %v1746, %v2079
          %v2081 = vpop.f32.mrf.mxu0
          %2082 = vdwg.mxu0
          %2083 = vmatpush.bf16.msra.mxu0 %v1972
          %2084 = vmatpush.bf16.msra.mxu0 %v1970
          %2085 = vmatpush.bf16.msra.mxu0 %v1968
          %2086 = vmatpush.bf16.msra.mxu0 %v1966
          %2087 = vmatpush.bf16.msra.mxu0 %v1964
          %2088 = vmatpush.bf16.msra.mxu0 %v1962
          %2089 = vmatpush.bf16.msra.mxu0 %v1960
          %2090 = vmatpush.bf16.msra.mxu0 %v1958
          %2091 = vmatmul.bf16.gmra.mxu0 %v1677
          %v2092 = vpop.f32.mrf.mxu0
          %v2093 = vadd.f32 %v2080, %v2092
          %v2094 = vpop.f32.mrf.mxu0
          %2095 = vdwg.mxu0
          %2096 = vmatpush.bf16.msra.mxu0 %v1988
          %2097 = vmatpush.bf16.msra.mxu0 %v1986
          %2098 = vmatpush.bf16.msra.mxu0 %v1984
          %2099 = vmatpush.bf16.msra.mxu0 %v1982
          %2100 = vmatpush.bf16.msra.mxu0 %v1980
          %2101 = vmatpush.bf16.msra.mxu0 %v1978
          %2102 = vmatpush.bf16.msra.mxu0 %v1976
          %2103 = vmatpush.bf16.msra.mxu0 %v1974
          %2104 = vmatmul.bf16.gmra.mxu0 %v1678
          %v2105 = vpop.f32.mrf.mxu0
          %v2106 = vadd.f32 %v2093, %v2105
          %v2107 = vpop.f32.mrf.mxu0
          %2108 = vdwg.mxu0
          %2109 = vmatpush.bf16.msra.mxu0 %v2004
          %2110 = vmatpush.bf16.msra.mxu0 %v2002
          %2111 = vmatpush.bf16.msra.mxu0 %v2000
          %2112 = vmatpush.bf16.msra.mxu0 %v1998
          %2113 = vmatpush.bf16.msra.mxu0 %v1996
          %2114 = vmatpush.bf16.msra.mxu0 %v1994
          %2115 = vmatpush.bf16.msra.mxu0 %v1992
          %2116 = vmatpush.bf16.msra.mxu0 %v1990
          %2117 = vmatmul.bf16.gmra.mxu0 %v1679
          %v2118 = vpop.f32.mrf.mxu0
          %v2119 = vadd.f32 %v2106, %v2118
          %v2120 = vpop.f32.mrf.mxu0
          %2121 = vdwg.mxu0
          %2122 = vmatpush.bf16.msra.mxu0 %v1957
          %2123 = vmatpush.bf16.msra.mxu0 %v1955
          %2124 = vmatpush.bf16.msra.mxu0 %v1953
          %2125 = vmatpush.bf16.msra.mxu0 %v1951
          %2126 = vmatpush.bf16.msra.mxu0 %v1949
          %2127 = vmatpush.bf16.msra.mxu0 %v1947
          %2128 = vmatpush.bf16.msra.mxu0 %v1945
          %2129 = vmatpush.bf16.msra.mxu0 %v1943
          %2130 = vmatmul.bf16.gmra.mxu0 %v1676
          %v2131 = vpop.f32.mrf.mxu0
          %v2132 = vadd.f32 %v1747, %v2131
          %v2133 = vpop.f32.mrf.mxu0
          %2134 = vdwg.mxu0
          %2135 = vmatpush.bf16.msra.mxu0 %v1973
          %2136 = vmatpush.bf16.msra.mxu0 %v1971
          %2137 = vmatpush.bf16.msra.mxu0 %v1969
          %2138 = vmatpush.bf16.msra.mxu0 %v1967
          %2139 = vmatpush.bf16.msra.mxu0 %v1965
          %2140 = vmatpush.bf16.msra.mxu0 %v1963
          %2141 = vmatpush.bf16.msra.mxu0 %v1961
          %2142 = vmatpush.bf16.msra.mxu0 %v1959
          %2143 = vmatmul.bf16.gmra.mxu0 %v1677
          %v2144 = vpop.f32.mrf.mxu0
          %v2145 = vadd.f32 %v2132, %v2144
          %v2146 = vpop.f32.mrf.mxu0
          %2147 = vdwg.mxu0
          %2148 = vmatpush.bf16.msra.mxu0 %v1989
          %2149 = vmatpush.bf16.msra.mxu0 %v1987
          %2150 = vmatpush.bf16.msra.mxu0 %v1985
          %2151 = vmatpush.bf16.msra.mxu0 %v1983
          %2152 = vmatpush.bf16.msra.mxu0 %v1981
          %2153 = vmatpush.bf16.msra.mxu0 %v1979
          %2154 = vmatpush.bf16.msra.mxu0 %v1977
          %2155 = vmatpush.bf16.msra.mxu0 %v1975
          %2156 = vmatmul.bf16.gmra.mxu0 %v1678
          %v2157 = vpop.f32.mrf.mxu0
          %v2158 = vadd.f32 %v2145, %v2157
          %v2159 = vpop.f32.mrf.mxu0
          %2160 = vdwg.mxu0
          %2161 = vmatpush.bf16.msra.mxu0 %v2005
          %2162 = vmatpush.bf16.msra.mxu0 %v2003
          %2163 = vmatpush.bf16.msra.mxu0 %v2001
          %2164 = vmatpush.bf16.msra.mxu0 %v1999
          %2165 = vmatpush.bf16.msra.mxu0 %v1997
          %2166 = vmatpush.bf16.msra.mxu0 %v1995
          %2167 = vmatpush.bf16.msra.mxu0 %v1993
          %2168 = vmatpush.bf16.msra.mxu0 %v1991
          %2169 = vmatmul.bf16.gmra.mxu0 %v1679
          %v2170 = vpop.f32.mrf.mxu0
          %v2171 = vadd.f32 %v2158, %v2170
          %v2172 = vpop.f32.mrf.mxu0
          %2173 = vdwg.mxu0
          %v2174 = vmax.f32 %v2119, 0.0
          %v2175 = vmax.f32 %v2171, 0.0
          %v2176 = vld [vmem:[%s8] sm:$0xff]
          %v2177 = vld [vmem:[%s8 + $0x8] sm:$0xff]
          %v2178 = vld [vmem:[%s8 + $0x10] sm:$0xff]
          %v2179 = vld [vmem:[%s8 + $0x18] sm:$0xff]
          %v2180 = vld [vmem:[%s8 + $0x20] sm:$0xff]
          %v2181 = vld [vmem:[%s8 + $0x28] sm:$0xff]
          %v2182 = vld [vmem:[%s8 + $0x30] sm:$0xff]
          %v2183 = vld [vmem:[%s8 + $0x38] sm:$0xff]
          %v2184 = vld [vmem:[%s8 + $0x40] sm:$0xff]
          %v2185 = vld [vmem:[%s8 + $0x48] sm:$0xff]
          %v2186 = vld [vmem:[%s8 + $0x50] sm:$0xff]
          %v2187 = vld [vmem:[%s8 + $0x58] sm:$0xff]
          %v2188 = vld [vmem:[%s8 + $0x60] sm:$0xff]
          %v2189 = vld [vmem:[%s8 + $0x68] sm:$0xff]
          %v2190 = vld [vmem:[%s8 + $0x70] sm:$0xff]
          %v2191 = vld [vmem:[%s8 + $0x78] sm:$0xff]
          %v2192 = vld [vmem:[%s8 + $0x80] sm:$0xff]
          %v2193 = vld [vmem:[%s8 + $0x88] sm:$0xff]
          %v2194 = vld [vmem:[%s8 + $0x90] sm:$0xff]
          %v2195 = vld [vmem:[%s8 + $0x98] sm:$0xff]
          %v2196 = vld [vmem:[%s8 + $0xa0] sm:$0xff]
          %v2197 = vld [vmem:[%s8 + $0xa8] sm:$0xff]
          %v2198 = vld [vmem:[%s8 + $0xb0] sm:$0xff]
          %v2199 = vld [vmem:[%s8 + $0xb8] sm:$0xff]
          %v2200 = vld [vmem:[%s8 + $0xc0] sm:$0xff]
          %v2201 = vld [vmem:[%s8 + $0xc8] sm:$0xff]
          %v2202 = vld [vmem:[%s8 + $0xd0] sm:$0xff]
          %v2203 = vld [vmem:[%s8 + $0xd8] sm:$0xff]
          %v2204 = vld [vmem:[%s8 + $0xe0] sm:$0xff]
          %v2205 = vld [vmem:[%s8 + $0xe8] sm:$0xff]
          %v2206 = vld [vmem:[%s8 + $0xf0] sm:$0xff]
          %v2207 = vld [vmem:[%s8 + $0xf8] sm:$0xff]
          %v2208 = vld [vmem:[%s9] sm:$0x1]
          %v2210 = vperm.slane %v2208, 0
          %2212 = vmatpush.msra.mxu0 %v2191
          %2213 = vmatpush.msra.mxu0 %v2190
          %2214 = vmatpush.msra.mxu0 %v2189
          %2215 = vmatpush.msra.mxu0 %v2188
          %2216 = vmatpush.msra.mxu0 %v2187
          %2217 = vmatpush.msra.mxu0 %v2186
          %2218 = vmatpush.msra.mxu0 %v2185
          %2219 = vmatpush.msra.mxu0 %v2184
          %2220 = vmatpush.msra.mxu0 %v2183
          %2221 = vmatpush.msra.mxu0 %v2182
          %2222 = vmatpush.msra.mxu0 %v2181
          %2223 = vmatpush.msra.mxu0 %v2180
          %2224 = vmatpush.msra.mxu0 %v2179
          %2225 = vmatpush.msra.mxu0 %v2178
          %2226 = vmatpush.msra.mxu0 %v2177
          %2227 = vmatpush.msra.mxu0 %v2176
          %2228 = vmatmul.f32.gmra.mxu0 %v2174
          %v2229 = vpop.f32.mrf.mxu0
          %v2230 = vadd.f32 %v2210, %v2229
          %2231 = vdwg.mxu0
          %2232 = vmatpush.msra.mxu0 %v2207
          %2233 = vmatpush.msra.mxu0 %v2206
          %2234 = vmatpush.msra.mxu0 %v2205
          %2235 = vmatpush.msra.mxu0 %v2204
          %2236 = vmatpush.msra.mxu0 %v2203
          %2237 = vmatpush.msra.mxu0 %v2202
          %2238 = vmatpush.msra.mxu0 %v2201
          %2239 = vmatpush.msra.mxu0 %v2200
          %2240 = vmatpush.msra.mxu0 %v2199
          %2241 = vmatpush.msra.mxu0 %v2198
          %2242 = vmatpush.msra.mxu0 %v2197
          %2243 = vmatpush.msra.mxu0 %v2196
          %2244 = vmatpush.msra.mxu0 %v2195
          %2245 = vmatpush.msra.mxu0 %v2194
          %2246 = vmatpush.msra.mxu0 %v2193
          %2247 = vmatpush.msra.mxu0 %v2192
          %2248 = vmatmul.f32.gmra.mxu0 %v2175
          %v2249 = vpop.f32.mrf.mxu0
          %v2250 = vadd.f32 %v2230, %v2249
          %2251 = vdwg.mxu0
          %vm2252 = vcmask 74752
          %2253 = vst.msk [vmem:[#allocation6] sm:$0x3] %vm2252, %v2250
        $region72: #{transformer_forward.1} parent=59 // pred_fallthru
          _
        // Predicated region
        $region73: #{transformer_forward.1} parent=59 // pred_check
          %p2254 = pneg %p273
        $region74: #{transformer_forward.1} parent=59 // pred_check_branch
          %2256 = sbr.rel (%p2254) target = $region76
        $region75: #{transformer_forward.1} parent=59 // pred_region
          %2258 = vsyncadd [#allocation5], 0
          %s2260 = sshll.u32 [#allocation6], 4
          %s2261 = int_to_ptr.vmem [resolvable:$true] %s2260
          %s2262 = sshll.u32 %s10, 4
          %s2263 = int_to_ptr.hbm [resolvable:$true] %s2262
          %2265 = dma.vmem_to_hbm [thread:$0]  %s2261, 32, %s2263, [#allocation5]
        $region76: #{transformer_forward.1} parent=59 // pred_fallthru
          _
        // Predicated region
        $region77: #{transformer_forward.1} parent=59 // pred_check
          %p2266 = pneg %p273
        $region78: #{transformer_forward.1} parent=59 // pred_check_branch
          %2268 = sbr.rel (%p2266) target = $region80
        $region79: #{transformer_forward.1} parent=59 // pred_region
          %2270 = dma.done [#allocation5], 32
        $region80: #{transformer_forward.1} parent=59 // pred_fallthru
          _
      $region60: #{transformer_forward.1} parent=5 // pred_fallthru
        _
      %p2271 = scmp.le.s32.totalorder 2, %s20
      // Predicated region
      $region81: #{transformer_forward.1} parent=5 // pred_check
        %p2272 = pneg %p2271
      $region82: #{transformer_forward.1} parent=5 // pred_check_branch
        %2274 = sbr.rel (%p2272) target = $region84
      $region83: #{transformer_forward.1} parent=5 // pred_region
        %s2275 = ssub.s32 %s20, 2
      $region84: #{transformer_forward.1} parent=5 // pred_fallthru
        _
    $region6: #{transformer_forward.1} parent=1 // loop_footer
      %s24 = sadd.s32 1, %s20
    $region7: #{transformer_forward.1} parent=1 // loop_footer_branch
      %19 = sbr.rel target = $region3
    $region8: #{transformer_forward.1} parent=1 // loop_exit
      _
    %2276 = vsyncpa [#allocation4], 1
    %s2277 = scalar_lea.sflag [#allocation4], 1
    %2278 = vsyncpa %s2277, 1
    %2279 = vsyncpa [#allocation5], 1
    %s2280 = scalar_lea.sflag [#allocation5], 1
    %2281 = vsyncpa %s2280, 1

</llo_original>
